<compile_context>
chip_gen: v7x
topology: tpu7x:2x2x1
jax: 0.10.0
libtpu: 0.0.40
codegen_flags: <defaults>
</compile_context>

<pallas_src>
import functools
import math

import jax
import jax.numpy as jnp
import numpy as np
from jax import lax
from jax.experimental import pallas as pl
from jax.experimental.pallas import tpu as pltpu


def _layernorm(x, w, b, eps=1e-5):
    # x: (T, D) f32, w/b: (1, D) f32
    mu = jnp.mean(x, axis=-1, keepdims=True)
    var = jnp.mean((x - mu) ** 2, axis=-1, keepdims=True)
    return (x - mu) * lax.rsqrt(var + eps) * w + b


def rmhsa_kernel(x_ref, mask_ref,
                 ln1_w_ref, ln1_b_ref,
                 wqkv_ref, bqkv_ref,
                 wd_ref, bd_ref,
                 ln2_w_ref, ln2_b_ref,
                 o_ref, attn_ref, *, n_heads):
    """One batch element per grid step; entire attention block resident in VMEM."""
    x = x_ref[...].astype(jnp.float32)        # (T, D)
    m = mask_ref[...].astype(jnp.float32)     # (1, T)
    A = wd_ref.shape[0]
    dh = A // n_heads
    scale = 1.0 / math.sqrt(dh)
    mm_dtype = wqkv_ref.dtype                 # f32 or bf16 MXU operands

    # pre-norm (f32 elementwise)
    xn = _layernorm(x, ln1_w_ref[...], ln1_b_ref[...])

    # fused Q/K/V projection: one MXU matmul with N = 3A, f32 accumulation
    qkv = jnp.dot(xn.astype(mm_dtype), wqkv_ref[...],
                  preferred_element_type=jnp.float32) + bqkv_ref[...]
    q = qkv[:, 0 * A:1 * A]
    k = qkv[:, 1 * A:2 * A]
    v = qkv[:, 2 * A:3 * A]

    neg = (1.0 - m) * 1e10                    # (1, T) additive key-mask bias
    for h in range(n_heads):                  # static unrolled head loop
        qh = q[:, h * dh:(h + 1) * dh]        # (T, dh)
        kh = k[:, h * dh:(h + 1) * dh]        # (T, dh)
        vh = v[:, h * dh:(h + 1) * dh]        # (T, dh)
        # contract last dims of both operands -> no explicit kh.T transpose
        s = lax.dot_general(qh, kh, (((1,), (1,)), ((), ())),
                            preferred_element_type=jnp.float32) * scale  # (T, T)
        s = s - neg
        s = s - jnp.max(s, axis=-1, keepdims=True)
        e = jnp.exp(s)
        inv_l = pl.reciprocal(jnp.sum(e, axis=-1, keepdims=True), approx=True)
        p = (e * m) * inv_l                   # softmax, mask applied post-softmax
        # write this head's output directly into the scratch slab slice
        attn_ref[:, h * dh:(h + 1) * dh] = jnp.dot(
            p, vh, preferred_element_type=jnp.float32)

    attn = attn_ref[...]                      # (T, A)
    dense = jnp.dot(attn.astype(mm_dtype), wd_ref[...],
                    preferred_element_type=jnp.float32) + bd_ref[...]
    out = _layernorm(x + dense, ln2_w_ref[...], ln2_b_ref[...])
    o_ref[...] = out.astype(o_ref.dtype)      # single lane-dense store


def residual_mhsa(x, mask, params, n_heads, *, weight_dtype=jnp.float32):
    """x: (B, T, D) f32, mask: (B, 1, T) f32 -> (B, T, d_attn) f32."""
    B, T, D = x.shape
    A = params["wq"].shape[1]
    assert D == A, "residual requires input_dim == d_attn"
    assert A % n_heads == 0

    # fuse Q/K/V weights/biases (wrapper-side, cheap); biases & LN params stay f32
    wqkv = jnp.concatenate([params["wq"], params["wk"], params["wv"]],
                           axis=1).astype(weight_dtype)          # (D, 3A)
    bqkv = jnp.concatenate([params["bq"], params["bk"], params["bv"]],
                           axis=1)                               # (1, 3A) f32
    wd = params["wd"].astype(weight_dtype)                       # (A, A)

    plist = [params["ln1_w"], params["ln1_b"], wqkv, bqkv,
             wd, params["bd"], params["ln2_w"], params["ln2_b"]]

    def _rep_spec(p):
        nd = p.ndim
        return pl.BlockSpec(p.shape, lambda b, _nd=nd: (0,) * _nd)

    in_specs = [
        pl.BlockSpec((pl.Squeezed(), T, D), lambda b: (b, 0, 0)),   # x  -> (T, D)
        pl.BlockSpec((pl.Squeezed(), 1, T), lambda b: (b, 0, 0)),   # mask -> (1, T)
    ] + [_rep_spec(p) for p in plist]

    out_specs = pl.BlockSpec((pl.Squeezed(), T, A), lambda b: (b, 0, 0))

    # cost estimate (advisory) + explicit VMEM budget
    flops = B * (6 * T * D * A + 4 * T * T * A + 2 * T * A * A)
    transcendentals = B * (n_heads * T * T + n_heads * T + 2 * T)
    w_bytes = sum(int(np.prod(p.shape)) * p.dtype.itemsize for p in plist)
    bytes_accessed = 4 * B * (T * D + T + T * A) + w_bytes
    act_bytes = 4 * (6 * T * D + 4 * T * A + 2 * T * T)
    vmem_limit = int(min(max(2 * (act_bytes + 2 * w_bytes), 32 * 2 ** 20),
                         64 * 2 ** 20))

    kernel = functools.partial(rmhsa_kernel, n_heads=n_heads)

    return pl.pallas_call(
        kernel,
        out_shape=jax.ShapeDtypeStruct((B, T, A), x.dtype),
        grid_spec=pltpu.PrefetchScalarGridSpec(
            num_scalar_prefetch=0,
            grid=(B,),
            in_specs=in_specs,
            out_specs=out_specs,
            scratch_shapes=[pltpu.VMEM((T, A), jnp.float32)],
        ),
        compiler_params=pltpu.CompilerParams(
            dimension_semantics=("parallel",),
            vmem_limit_bytes=vmem_limit),
        cost_estimate=pl.CostEstimate(
            flops=flops,
            transcendentals=transcendentals,
            bytes_accessed=bytes_accessed),
    )(x, mask, *plist)


def _reference(x, mask, params, n_heads):
    """Pure-JAX reference mirroring the PyTorch module semantics."""
    def ln(z, w, b, eps=1e-5):
        mu = jnp.mean(z, -1, keepdims=True)
        var = jnp.mean((z - mu) ** 2, -1, keepdims=True)
        return (z - mu) / jnp.sqrt(var + eps) * w[0] + b[0]

    B, T, D = x.shape
    A = params["wq"].shape[1]
    dh = A // n_heads
    xn = ln(x, params["ln1_w"], params["ln1_b"])
    q = xn @ params["wq"] + params["bq"][0]
    k = xn @ params["wk"] + params["bk"][0]
    v = xn @ params["wv"] + params["bv"][0]
    q = q.reshape(B, T, n_heads, dh).transpose(0, 2, 1, 3)
    k = k.reshape(B, T, n_heads, dh).transpose(0, 2, 1, 3)
    v = v.reshape(B, T, n_heads, dh).transpose(0, 2, 1, 3)
    s = jnp.einsum("bhtd,bhsd->bhts", q, k) / math.sqrt(dh)
    m = mask[:, None, :, :]                      # (B,1,1,T)
    s = s - (1.0 - m) * 1e10
    s = s - jnp.max(s, axis=-1, keepdims=True)
    p = jax.nn.softmax(s, axis=-1) * m
    o = jnp.einsum("bhts,bhsd->bhtd", p, v)
    o = o.transpose(0, 2, 1, 3).reshape(B, T, A)
    dense = o @ params["wd"] + params["bd"][0]
    return ln(x + dense, params["ln2_w"], params["ln2_b"])


def _init_params(key, input_dim, d_attn):
    ks = jax.random.split(key, 4)

    def lin(k, fan_in, fan_out):
        kw, kb = jax.random.split(k)
        bound = 1.0 / math.sqrt(fan_in)
        w = jax.random.uniform(kw, (fan_in, fan_out), jnp.float32, -bound, bound)
        b = jax.random.uniform(kb, (1, fan_out), jnp.float32, -bound, bound)
        return w, b

    wq, bq = lin(ks[0], input_dim, d_attn)
    wk, bk = lin(ks[1], input_dim, d_attn)
    wv, bv = lin(ks[2], input_dim, d_attn)
    wd, bd = lin(ks[3], d_attn, d_attn)
    return {
        "ln1_w": jnp.ones((1, input_dim), jnp.float32),
        "ln1_b": jnp.zeros((1, input_dim), jnp.float32),
        "wq": wq, "bq": bq, "wk": wk, "bk": bk, "wv": wv, "bv": bv,
        "wd": wd, "bd": bd,
        "ln2_w": jnp.ones((1, d_attn), jnp.float32),
        "ln2_b": jnp.zeros((1, d_attn), jnp.float32),
    }


if __name__ == "__main__":
    B, T = 2, 8
    input_dim = d_attn = 32     # residual add forces input_dim == d_attn
    n_heads = 4

    key = jax.random.PRNGKey(0)
    kx, kp = jax.random.split(key)
    x = jax.random.normal(kx, (B, T, input_dim), jnp.float32)
    # deterministic mask: first batch keeps all tokens, second masks the last 3
    lengths = jnp.array([T, T - 3], jnp.int32)
    mask = (jnp.arange(T)[None, :] < lengths[:, None]).astype(jnp.float32)
    mask = mask[:, None, :]     # (B, 1, T)

    params = _init_params(kp, input_dim, d_attn)

    # f32 path: strict correctness check against the pure-JAX reference
    out = jax.block_until_ready(residual_mhsa(x, mask, params, n_heads))
    ref = _reference(x, mask, params, n_heads)
    np.testing.assert_allclose(np.asarray(out), np.asarray(ref),
                               rtol=2e-3, atol=2e-3)

    # bf16-weight fast path (MXU operands bf16, f32 accumulation): run + sanity check
    out_bf16 = jax.block_until_ready(
        residual_mhsa(x, mask, params, n_heads, weight_dtype=jnp.bfloat16))
    assert bool(jnp.all(jnp.isfinite(out_bf16)))
    assert float(jnp.max(jnp.abs(out_bf16.astype(jnp.float32) - ref))) < 0.25

    print("KERNEL_OK")
</pallas_src>

<mosaic_0001>
module attributes {stable_mosaic.version = 11 : i64} {
  func.func @rmhsa_kernel(%arg0: i32, %arg1: memref<1x8x32xf32, #tpu.memory_space<vmem>>, %arg2: memref<1x1x8xf32, #tpu.memory_space<vmem>>, %arg3: memref<1x32xf32, #tpu.memory_space<vmem>>, %arg4: memref<1x32xf32, #tpu.memory_space<vmem>>, %arg5: memref<32x96xf32, #tpu.memory_space<vmem>>, %arg6: memref<1x96xf32, #tpu.memory_space<vmem>>, %arg7: memref<32x32xf32, #tpu.memory_space<vmem>>, %arg8: memref<1x32xf32, #tpu.memory_space<vmem>>, %arg9: memref<1x32xf32, #tpu.memory_space<vmem>>, %arg10: memref<1x32xf32, #tpu.memory_space<vmem>>, %arg11: memref<1x8x32xf32, #tpu.memory_space<vmem>>, %arg12: memref<8x32xf32, #tpu.memory_space<vmem>>) attributes {dimension_semantics = [#tpu.dimension_semantics<parallel>], iteration_bounds = array<i64: 2>, scalar_prefetch = 0 : i64, scratch_operands = 1 : i64, tpu.core_type = #tpu.core_type<tc>, window_params = [{transform_indices = @transform_0, window_bounds = array<i64: 1, 8, 32>}, {transform_indices = @transform_1, window_bounds = array<i64: 1, 1, 8>}, {pipeline_mode = #tpu.pipeline_mode<synchronous>, transform_indices = @transform_2, window_bounds = array<i64: 1, 32>}, {pipeline_mode = #tpu.pipeline_mode<synchronous>, transform_indices = @transform_3, window_bounds = array<i64: 1, 32>}, {pipeline_mode = #tpu.pipeline_mode<synchronous>, transform_indices = @transform_4, window_bounds = array<i64: 32, 96>}, {pipeline_mode = #tpu.pipeline_mode<synchronous>, transform_indices = @transform_5, window_bounds = array<i64: 1, 96>}, {pipeline_mode = #tpu.pipeline_mode<synchronous>, transform_indices = @transform_6, window_bounds = array<i64: 32, 32>}, {pipeline_mode = #tpu.pipeline_mode<synchronous>, transform_indices = @transform_7, window_bounds = array<i64: 1, 32>}, {pipeline_mode = #tpu.pipeline_mode<synchronous>, transform_indices = @transform_8, window_bounds = array<i64: 1, 32>}, {pipeline_mode = #tpu.pipeline_mode<synchronous>, transform_indices = @transform_9, window_bounds = array<i64: 1, 32>}, {transform_indices = @transform_10, window_bounds = array<i64: 1, 8, 32>}]} {
    %c0 = arith.constant 0 : index
    %c0_0 = arith.constant 0 : index
    %c0_1 = arith.constant 0 : index
    %0 = vector.load %arg1[%c0, %c0_0, %c0_1] : memref<1x8x32xf32, #tpu.memory_space<vmem>>, vector<1x8x32xf32>
    %1 = vector.shape_cast %0 : vector<1x8x32xf32> to vector<8x32xf32>
    %c0_2 = arith.constant 0 : index
    %c0_3 = arith.constant 0 : index
    %c0_4 = arith.constant 0 : index
    %2 = vector.load %arg2[%c0_2, %c0_3, %c0_4] : memref<1x1x8xf32, #tpu.memory_space<vmem>>, vector<1x1x8xf32>
    %3 = vector.shape_cast %2 : vector<1x1x8xf32> to vector<1x8xf32>
    %c0_5 = arith.constant 0 : index
    %c0_6 = arith.constant 0 : index
    %4 = vector.load %arg3[%c0_5, %c0_6] : memref<1x32xf32, #tpu.memory_space<vmem>>, vector<1x32xf32>
    %c0_7 = arith.constant 0 : index
    %c0_8 = arith.constant 0 : index
    %5 = vector.load %arg4[%c0_7, %c0_8] : memref<1x32xf32, #tpu.memory_space<vmem>>, vector<1x32xf32>
    %cst = arith.constant dense<0.000000e+00> : vector<8xf32>
    %6 = vector.multi_reduction <add>, %1, %cst [1] : vector<8x32xf32> to vector<8xf32>
    %7 = vector.shape_cast %6 : vector<8xf32> to vector<8x1xf32>
    %cst_9 = arith.constant 3.200000e+01 : f32
    %8 = vector.broadcast %cst_9 : f32 to vector<8x1xf32>
    %9 = arith.divf %7, %8 : vector<8x1xf32>
    %10 = vector.broadcast %9 : vector<8x1xf32> to vector<8x32xf32>
    %11 = arith.subf %1, %10 : vector<8x32xf32>
    %12 = arith.mulf %11, %11 : vector<8x32xf32>
    %cst_10 = arith.constant dense<0.000000e+00> : vector<8xf32>
    %13 = vector.multi_reduction <add>, %12, %cst_10 [1] : vector<8x32xf32> to vector<8xf32>
    %14 = vector.shape_cast %13 : vector<8xf32> to vector<8x1xf32>
    %cst_11 = arith.constant 3.200000e+01 : f32
    %15 = vector.broadcast %cst_11 : f32 to vector<8x1xf32>
    %16 = arith.divf %14, %15 : vector<8x1xf32>
    %17 = vector.broadcast %9 : vector<8x1xf32> to vector<8x32xf32>
    %18 = arith.subf %1, %17 : vector<8x32xf32>
    %cst_12 = arith.constant 9.99999974E-6 : f32
    %19 = vector.broadcast %cst_12 : f32 to vector<8x1xf32>
    %20 = arith.addf %16, %19 : vector<8x1xf32>
    %21 = math.rsqrt %20 : vector<8x1xf32>
    %22 = vector.broadcast %21 : vector<8x1xf32> to vector<8x32xf32>
    %23 = arith.mulf %18, %22 : vector<8x32xf32>
    %24 = vector.broadcast %4 : vector<1x32xf32> to vector<8x32xf32>
    %25 = arith.mulf %23, %24 : vector<8x32xf32>
    %26 = vector.broadcast %5 : vector<1x32xf32> to vector<8x32xf32>
    %27 = arith.addf %25, %26 : vector<8x32xf32>
    %c0_13 = arith.constant 0 : index
    %c0_14 = arith.constant 0 : index
    %28 = vector.load %arg5[%c0_13, %c0_14] : memref<32x96xf32, #tpu.memory_space<vmem>>, vector<32x96xf32>
    %cst_15 = arith.constant dense<0.000000e+00> : vector<8x96xf32>
    %29 = tpu.matmul %27, %28, %cst_15 {dimension_numbers = #tpu.dot_dimension_numbers<[1], [0], [0], [1], [0, 0, 1, 1], [], []>} : vector<8x32xf32>, vector<32x96xf32>, vector<8x96xf32> -> vector<8x96xf32>
    %c0_16 = arith.constant 0 : index
    %c0_17 = arith.constant 0 : index
    %30 = vector.load %arg6[%c0_16, %c0_17] : memref<1x96xf32, #tpu.memory_space<vmem>>, vector<1x96xf32>
    %31 = vector.broadcast %30 : vector<1x96xf32> to vector<8x96xf32>
    %32 = arith.addf %29, %31 : vector<8x96xf32>
    %33 = vector.extract_strided_slice %32 {offsets = [0, 0], sizes = [8, 32], strides = [1, 1]} : vector<8x96xf32> to vector<8x32xf32>
    %34 = vector.extract_strided_slice %32 {offsets = [0, 32], sizes = [8, 32], strides = [1, 1]} : vector<8x96xf32> to vector<8x32xf32>
    %35 = vector.extract_strided_slice %32 {offsets = [0, 64], sizes = [8, 32], strides = [1, 1]} : vector<8x96xf32> to vector<8x32xf32>
    %cst_18 = arith.constant 1.000000e+00 : f32
    %36 = vector.broadcast %cst_18 : f32 to vector<1x8xf32>
    %37 = arith.subf %36, %3 : vector<1x8xf32>
    %cst_19 = arith.constant 1.000000e+10 : f32
    %38 = vector.broadcast %cst_19 : f32 to vector<1x8xf32>
    %39 = arith.mulf %37, %38 : vector<1x8xf32>
    %40 = vector.extract_strided_slice %33 {offsets = [0, 0], sizes = [8, 8], strides = [1, 1]} : vector<8x32xf32> to vector<8x8xf32>
    %41 = vector.extract_strided_slice %34 {offsets = [0, 0], sizes = [8, 8], strides = [1, 1]} : vector<8x32xf32> to vector<8x8xf32>
    %42 = vector.extract_strided_slice %35 {offsets = [0, 0], sizes = [8, 8], strides = [1, 1]} : vector<8x32xf32> to vector<8x8xf32>
    %cst_20 = arith.constant dense<0.000000e+00> : vector<8x8xf32>
    %43 = tpu.matmul %40, %41, %cst_20 {dimension_numbers = #tpu.dot_dimension_numbers<[1], [1], [0], [0], [0, 0, 1, 0], [], []>} : vector<8x8xf32>, vector<8x8xf32>, vector<8x8xf32> -> vector<8x8xf32>
    %cst_21 = arith.constant 0.353553385 : f32
    %44 = vector.broadcast %cst_21 : f32 to vector<8x8xf32>
    %45 = arith.mulf %43, %44 : vector<8x8xf32>
    %46 = vector.broadcast %39 : vector<1x8xf32> to vector<8x8xf32>
    %47 = arith.subf %45, %46 : vector<8x8xf32>
    %cst_22 = arith.constant dense<0xFF800000> : vector<8xf32>
    %48 = vector.multi_reduction <maximumf>, %47, %cst_22 [1] : vector<8x8xf32> to vector<8xf32>
    %49 = vector.shape_cast %48 : vector<8xf32> to vector<8x1xf32>
    %50 = vector.broadcast %49 : vector<8x1xf32> to vector<8x8xf32>
    %51 = arith.subf %47, %50 : vector<8x8xf32>
    %52 = math.exp %51 : vector<8x8xf32>
    %cst_23 = arith.constant dense<0.000000e+00> : vector<8xf32>
    %53 = vector.multi_reduction <add>, %52, %cst_23 [1] : vector<8x8xf32> to vector<8xf32>
    %54 = vector.shape_cast %53 : vector<8xf32> to vector<8x1xf32>
    %55 = tpu.reciprocal %54 {approx = true} : vector<8x1xf32> -> vector<8x1xf32>
    %56 = vector.broadcast %3 : vector<1x8xf32> to vector<8x8xf32>
    %57 = arith.mulf %52, %56 : vector<8x8xf32>
    %58 = vector.broadcast %55 : vector<8x1xf32> to vector<8x8xf32>
    %59 = arith.mulf %57, %58 : vector<8x8xf32>
    %cst_24 = arith.constant dense<0.000000e+00> : vector<8x8xf32>
    %60 = tpu.matmul %59, %42, %cst_24 {dimension_numbers = #tpu.dot_dimension_numbers<[1], [0], [0], [1], [0, 0, 1, 1], [], []>} : vector<8x8xf32>, vector<8x8xf32>, vector<8x8xf32> -> vector<8x8xf32>
    %c0_25 = arith.constant 0 : index
    %c0_26 = arith.constant 0 : index
    %61 = vector.load %arg12[%c0_25, %c0_26] : memref<8x32xf32, #tpu.memory_space<vmem>>, vector<8x8xf32>
    tpu.vector_store %arg12[%c0_25, %c0_26], %60 {strides = array<i32>} : memref<8x32xf32, #tpu.memory_space<vmem>>, vector<8x8xf32>,
    %62 = vector.extract_strided_slice %33 {offsets = [0, 8], sizes = [8, 8], strides = [1, 1]} : vector<8x32xf32> to vector<8x8xf32>
    %63 = vector.extract_strided_slice %34 {offsets = [0, 8], sizes = [8, 8], strides = [1, 1]} : vector<8x32xf32> to vector<8x8xf32>
    %64 = vector.extract_strided_slice %35 {offsets = [0, 8], sizes = [8, 8], strides = [1, 1]} : vector<8x32xf32> to vector<8x8xf32>
    %cst_27 = arith.constant dense<0.000000e+00> : vector<8x8xf32>
    %65 = tpu.matmul %62, %63, %cst_27 {dimension_numbers = #tpu.dot_dimension_numbers<[1], [1], [0], [0], [0, 0, 1, 0], [], []>} : vector<8x8xf32>, vector<8x8xf32>, vector<8x8xf32> -> vector<8x8xf32>
    %cst_28 = arith.constant 0.353553385 : f32
    %66 = vector.broadcast %cst_28 : f32 to vector<8x8xf32>
    %67 = arith.mulf %65, %66 : vector<8x8xf32>
    %68 = vector.broadcast %39 : vector<1x8xf32> to vector<8x8xf32>
    %69 = arith.subf %67, %68 : vector<8x8xf32>
    %cst_29 = arith.constant dense<0xFF800000> : vector<8xf32>
    %70 = vector.multi_reduction <maximumf>, %69, %cst_29 [1] : vector<8x8xf32> to vector<8xf32>
    %71 = vector.shape_cast %70 : vector<8xf32> to vector<8x1xf32>
    %72 = vector.broadcast %71 : vector<8x1xf32> to vector<8x8xf32>
    %73 = arith.subf %69, %72 : vector<8x8xf32>
    %74 = math.exp %73 : vector<8x8xf32>
    %cst_30 = arith.constant dense<0.000000e+00> : vector<8xf32>
    %75 = vector.multi_reduction <add>, %74, %cst_30 [1] : vector<8x8xf32> to vector<8xf32>
    %76 = vector.shape_cast %75 : vector<8xf32> to vector<8x1xf32>
    %77 = tpu.reciprocal %76 {approx = true} : vector<8x1xf32> -> vector<8x1xf32>
    %78 = vector.broadcast %3 : vector<1x8xf32> to vector<8x8xf32>
    %79 = arith.mulf %74, %78 : vector<8x8xf32>
    %80 = vector.broadcast %77 : vector<8x1xf32> to vector<8x8xf32>
    %81 = arith.mulf %79, %80 : vector<8x8xf32>
    %cst_31 = arith.constant dense<0.000000e+00> : vector<8x8xf32>
    %82 = tpu.matmul %81, %64, %cst_31 {dimension_numbers = #tpu.dot_dimension_numbers<[1], [0], [0], [1], [0, 0, 1, 1], [], []>} : vector<8x8xf32>, vector<8x8xf32>, vector<8x8xf32> -> vector<8x8xf32>
    %c0_32 = arith.constant 0 : index
    %c8 = arith.constant 8 : index
    %83 = vector.load %arg12[%c0_32, %c8] : memref<8x32xf32, #tpu.memory_space<vmem>>, vector<8x8xf32>
    tpu.vector_store %arg12[%c0_32, %c8], %82 {strides = array<i32>} : memref<8x32xf32, #tpu.memory_space<vmem>>, vector<8x8xf32>,
    %84 = vector.extract_strided_slice %33 {offsets = [0, 16], sizes = [8, 8], strides = [1, 1]} : vector<8x32xf32> to vector<8x8xf32>
    %85 = vector.extract_strided_slice %34 {offsets = [0, 16], sizes = [8, 8], strides = [1, 1]} : vector<8x32xf32> to vector<8x8xf32>
    %86 = vector.extract_strided_slice %35 {offsets = [0, 16], sizes = [8, 8], strides = [1, 1]} : vector<8x32xf32> to vector<8x8xf32>
    %cst_33 = arith.constant dense<0.000000e+00> : vector<8x8xf32>
    %87 = tpu.matmul %84, %85, %cst_33 {dimension_numbers = #tpu.dot_dimension_numbers<[1], [1], [0], [0], [0, 0, 1, 0], [], []>} : vector<8x8xf32>, vector<8x8xf32>, vector<8x8xf32> -> vector<8x8xf32>
    %cst_34 = arith.constant 0.353553385 : f32
    %88 = vector.broadcast %cst_34 : f32 to vector<8x8xf32>
    %89 = arith.mulf %87, %88 : vector<8x8xf32>
    %90 = vector.broadcast %39 : vector<1x8xf32> to vector<8x8xf32>
    %91 = arith.subf %89, %90 : vector<8x8xf32>
    %cst_35 = arith.constant dense<0xFF800000> : vector<8xf32>
    %92 = vector.multi_reduction <maximumf>, %91, %cst_35 [1] : vector<8x8xf32> to vector<8xf32>
    %93 = vector.shape_cast %92 : vector<8xf32> to vector<8x1xf32>
    %94 = vector.broadcast %93 : vector<8x1xf32> to vector<8x8xf32>
    %95 = arith.subf %91, %94 : vector<8x8xf32>
    %96 = math.exp %95 : vector<8x8xf32>
    %cst_36 = arith.constant dense<0.000000e+00> : vector<8xf32>
    %97 = vector.multi_reduction <add>, %96, %cst_36 [1] : vector<8x8xf32> to vector<8xf32>
    %98 = vector.shape_cast %97 : vector<8xf32> to vector<8x1xf32>
    %99 = tpu.reciprocal %98 {approx = true} : vector<8x1xf32> -> vector<8x1xf32>
    %100 = vector.broadcast %3 : vector<1x8xf32> to vector<8x8xf32>
    %101 = arith.mulf %96, %100 : vector<8x8xf32>
    %102 = vector.broadcast %99 : vector<8x1xf32> to vector<8x8xf32>
    %103 = arith.mulf %101, %102 : vector<8x8xf32>
    %cst_37 = arith.constant dense<0.000000e+00> : vector<8x8xf32>
    %104 = tpu.matmul %103, %86, %cst_37 {dimension_numbers = #tpu.dot_dimension_numbers<[1], [0], [0], [1], [0, 0, 1, 1], [], []>} : vector<8x8xf32>, vector<8x8xf32>, vector<8x8xf32> -> vector<8x8xf32>
    %c0_38 = arith.constant 0 : index
    %c16 = arith.constant 16 : index
    %105 = vector.load %arg12[%c0_38, %c16] : memref<8x32xf32, #tpu.memory_space<vmem>>, vector<8x8xf32>
    tpu.vector_store %arg12[%c0_38, %c16], %104 {strides = array<i32>} : memref<8x32xf32, #tpu.memory_space<vmem>>, vector<8x8xf32>,
    %106 = vector.extract_strided_slice %33 {offsets = [0, 24], sizes = [8, 8], strides = [1, 1]} : vector<8x32xf32> to vector<8x8xf32>
    %107 = vector.extract_strided_slice %34 {offsets = [0, 24], sizes = [8, 8], strides = [1, 1]} : vector<8x32xf32> to vector<8x8xf32>
    %108 = vector.extract_strided_slice %35 {offsets = [0, 24], sizes = [8, 8], strides = [1, 1]} : vector<8x32xf32> to vector<8x8xf32>
    %cst_39 = arith.constant dense<0.000000e+00> : vector<8x8xf32>
    %109 = tpu.matmul %106, %107, %cst_39 {dimension_numbers = #tpu.dot_dimension_numbers<[1], [1], [0], [0], [0, 0, 1, 0], [], []>} : vector<8x8xf32>, vector<8x8xf32>, vector<8x8xf32> -> vector<8x8xf32>
    %cst_40 = arith.constant 0.353553385 : f32
    %110 = vector.broadcast %cst_40 : f32 to vector<8x8xf32>
    %111 = arith.mulf %109, %110 : vector<8x8xf32>
    %112 = vector.broadcast %39 : vector<1x8xf32> to vector<8x8xf32>
    %113 = arith.subf %111, %112 : vector<8x8xf32>
    %cst_41 = arith.constant dense<0xFF800000> : vector<8xf32>
    %114 = vector.multi_reduction <maximumf>, %113, %cst_41 [1] : vector<8x8xf32> to vector<8xf32>
    %115 = vector.shape_cast %114 : vector<8xf32> to vector<8x1xf32>
    %116 = vector.broadcast %115 : vector<8x1xf32> to vector<8x8xf32>
    %117 = arith.subf %113, %116 : vector<8x8xf32>
    %118 = math.exp %117 : vector<8x8xf32>
    %cst_42 = arith.constant dense<0.000000e+00> : vector<8xf32>
    %119 = vector.multi_reduction <add>, %118, %cst_42 [1] : vector<8x8xf32> to vector<8xf32>
    %120 = vector.shape_cast %119 : vector<8xf32> to vector<8x1xf32>
    %121 = tpu.reciprocal %120 {approx = true} : vector<8x1xf32> -> vector<8x1xf32>
    %122 = vector.broadcast %3 : vector<1x8xf32> to vector<8x8xf32>
    %123 = arith.mulf %118, %122 : vector<8x8xf32>
    %124 = vector.broadcast %121 : vector<8x1xf32> to vector<8x8xf32>
    %125 = arith.mulf %123, %124 : vector<8x8xf32>
    %cst_43 = arith.constant dense<0.000000e+00> : vector<8x8xf32>
    %126 = tpu.matmul %125, %108, %cst_43 {dimension_numbers = #tpu.dot_dimension_numbers<[1], [0], [0], [1], [0, 0, 1, 1], [], []>} : vector<8x8xf32>, vector<8x8xf32>, vector<8x8xf32> -> vector<8x8xf32>
    %c0_44 = arith.constant 0 : index
    %c24 = arith.constant 24 : index
    %127 = vector.load %arg12[%c0_44, %c24] : memref<8x32xf32, #tpu.memory_space<vmem>>, vector<8x8xf32>
    tpu.vector_store %arg12[%c0_44, %c24], %126 {strides = array<i32>} : memref<8x32xf32, #tpu.memory_space<vmem>>, vector<8x8xf32>,
    %c0_45 = arith.constant 0 : index
    %c0_46 = arith.constant 0 : index
    %128 = vector.load %arg12[%c0_45, %c0_46] : memref<8x32xf32, #tpu.memory_space<vmem>>, vector<8x32xf32>
    %c0_47 = arith.constant 0 : index
    %c0_48 = arith.constant 0 : index
    %129 = vector.load %arg7[%c0_47, %c0_48] : memref<32x32xf32, #tpu.memory_space<vmem>>, vector<32x32xf32>
    %cst_49 = arith.constant dense<0.000000e+00> : vector<8x32xf32>
    %130 = tpu.matmul %128, %129, %cst_49 {dimension_numbers = #tpu.dot_dimension_numbers<[1], [0], [0], [1], [0, 0, 1, 1], [], []>} : vector<8x32xf32>, vector<32x32xf32>, vector<8x32xf32> -> vector<8x32xf32>
    %c0_50 = arith.constant 0 : index
    %c0_51 = arith.constant 0 : index
    %131 = vector.load %arg8[%c0_50, %c0_51] : memref<1x32xf32, #tpu.memory_space<vmem>>, vector<1x32xf32>
    %132 = vector.broadcast %131 : vector<1x32xf32> to vector<8x32xf32>
    %133 = arith.addf %130, %132 : vector<8x32xf32>
    %134 = arith.addf %1, %133 : vector<8x32xf32>
    %c0_52 = arith.constant 0 : index
    %c0_53 = arith.constant 0 : index
    %135 = vector.load %arg9[%c0_52, %c0_53] : memref<1x32xf32, #tpu.memory_space<vmem>>, vector<1x32xf32>
    %c0_54 = arith.constant 0 : index
    %c0_55 = arith.constant 0 : index
    %136 = vector.load %arg10[%c0_54, %c0_55] : memref<1x32xf32, #tpu.memory_space<vmem>>, vector<1x32xf32>
    %cst_56 = arith.constant dense<0.000000e+00> : vector<8xf32>
    %137 = vector.multi_reduction <add>, %134, %cst_56 [1] : vector<8x32xf32> to vector<8xf32>
    %138 = vector.shape_cast %137 : vector<8xf32> to vector<8x1xf32>
    %cst_57 = arith.constant 3.200000e+01 : f32
    %139 = vector.broadcast %cst_57 : f32 to vector<8x1xf32>
    %140 = arith.divf %138, %139 : vector<8x1xf32>
    %141 = vector.broadcast %140 : vector<8x1xf32> to vector<8x32xf32>
    %142 = arith.subf %134, %141 : vector<8x32xf32>
    %143 = arith.mulf %142, %142 : vector<8x32xf32>
    %cst_58 = arith.constant dense<0.000000e+00> : vector<8xf32>
    %144 = vector.multi_reduction <add>, %143, %cst_58 [1] : vector<8x32xf32> to vector<8xf32>
    %145 = vector.shape_cast %144 : vector<8xf32> to vector<8x1xf32>
    %cst_59 = arith.constant 3.200000e+01 : f32
    %146 = vector.broadcast %cst_59 : f32 to vector<8x1xf32>
    %147 = arith.divf %145, %146 : vector<8x1xf32>
    %148 = vector.broadcast %140 : vector<8x1xf32> to vector<8x32xf32>
    %149 = arith.subf %134, %148 : vector<8x32xf32>
    %cst_60 = arith.constant 9.99999974E-6 : f32
    %150 = vector.broadcast %cst_60 : f32 to vector<8x1xf32>
    %151 = arith.addf %147, %150 : vector<8x1xf32>
    %152 = math.rsqrt %151 : vector<8x1xf32>
    %153 = vector.broadcast %152 : vector<8x1xf32> to vector<8x32xf32>
    %154 = arith.mulf %149, %153 : vector<8x32xf32>
    %155 = vector.broadcast %135 : vector<1x32xf32> to vector<8x32xf32>
    %156 = arith.mulf %154, %155 : vector<8x32xf32>
    %157 = vector.broadcast %136 : vector<1x32xf32> to vector<8x32xf32>
    %158 = arith.addf %156, %157 : vector<8x32xf32>
    %c0_61 = arith.constant 0 : index
    %c0_62 = arith.constant 0 : index
    %c0_63 = arith.constant 0 : index
    %159 = vector.load %arg11[%c0_61, %c0_62, %c0_63] : memref<1x8x32xf32, #tpu.memory_space<vmem>>, vector<1x8x32xf32>
    %160 = vector.shape_cast %159 : vector<1x8x32xf32> to vector<8x32xf32>
    %161 = vector.shape_cast %158 : vector<8x32xf32> to vector<1x8x32xf32>
    tpu.vector_store %arg11[%c0_61, %c0_62, %c0_63], %161 {strides = array<i32>} : memref<1x8x32xf32, #tpu.memory_space<vmem>>, vector<1x8x32xf32>,
    return
  }
  func.func @transform_0(%arg0: i32) -> (i32, i32, i32) {
    %c0_i32 = arith.constant 0 : i32
    %c0_i32_0 = arith.constant 0 : i32
    %c0_i32_1 = arith.constant 0 : i32
    return %arg0, %c0_i32, %c0_i32_0 : i32, i32, i32
  }
  func.func @transform_1(%arg0: i32) -> (i32, i32, i32) {
    %c0_i32 = arith.constant 0 : i32
    %c0_i32_0 = arith.constant 0 : i32
    %c0_i32_1 = arith.constant 0 : i32
    return %arg0, %c0_i32, %c0_i32_0 : i32, i32, i32
  }
  func.func @transform_2(%arg0: i32) -> (i32, i32) {
    %c0_i32 = arith.constant 0 : i32
    %c0_i32_0 = arith.constant 0 : i32
    %c0_i32_1 = arith.constant 0 : i32
    return %c0_i32, %c0_i32_0 : i32, i32
  }
  func.func @transform_3(%arg0: i32) -> (i32, i32) {
    %c0_i32 = arith.constant 0 : i32
    %c0_i32_0 = arith.constant 0 : i32
    %c0_i32_1 = arith.constant 0 : i32
    return %c0_i32, %c0_i32_0 : i32, i32
  }
  func.func @transform_4(%arg0: i32) -> (i32, i32) {
    %c0_i32 = arith.constant 0 : i32
    %c0_i32_0 = arith.constant 0 : i32
    %c0_i32_1 = arith.constant 0 : i32
    return %c0_i32, %c0_i32_0 : i32, i32
  }
  func.func @transform_5(%arg0: i32) -> (i32, i32) {
    %c0_i32 = arith.constant 0 : i32
    %c0_i32_0 = arith.constant 0 : i32
    %c0_i32_1 = arith.constant 0 : i32
    return %c0_i32, %c0_i32_0 : i32, i32
  }
  func.func @transform_6(%arg0: i32) -> (i32, i32) {
    %c0_i32 = arith.constant 0 : i32
    %c0_i32_0 = arith.constant 0 : i32
    %c0_i32_1 = arith.constant 0 : i32
    return %c0_i32, %c0_i32_0 : i32, i32
  }
  func.func @transform_7(%arg0: i32) -> (i32, i32) {
    %c0_i32 = arith.constant 0 : i32
    %c0_i32_0 = arith.constant 0 : i32
    %c0_i32_1 = arith.constant 0 : i32
    return %c0_i32, %c0_i32_0 : i32, i32
  }
  func.func @transform_8(%arg0: i32) -> (i32, i32) {
    %c0_i32 = arith.constant 0 : i32
    %c0_i32_0 = arith.constant 0 : i32
    %c0_i32_1 = arith.constant 0 : i32
    return %c0_i32, %c0_i32_0 : i32, i32
  }
  func.func @transform_9(%arg0: i32) -> (i32, i32) {
    %c0_i32 = arith.constant 0 : i32
    %c0_i32_0 = arith.constant 0 : i32
    %c0_i32_1 = arith.constant 0 : i32
    return %c0_i32, %c0_i32_0 : i32, i32
  }
  func.func @transform_10(%arg0: i32) -> (i32, i32, i32) {
    %c0_i32 = arith.constant 0 : i32
    %c0_i32_0 = arith.constant 0 : i32
    %c0_i32_1 = arith.constant 0 : i32
    return %arg0, %c0_i32, %c0_i32_0 : i32, i32, i32
  }
}

</mosaic_0001>

<llo_original>
// kernel: tpu_custom_call.1
$region0: #{tpu_custom_call.1}
  #allocation0 [shape = 'u32[]', space=smem, size = 0x4, offset = 0x4, fixed_abs, tag = 'smem constant byte address 0x4 - core index']
  #allocation1 [shape = 'u32[144,128]{1,0:T(1,128)}', space=vmem, size = 0x12000, scoped, tag = 'internal scratch']
  #allocation2 [shape = 'f32[8,32]{1,0:T(8,128)}', space=vmem, size = 0x1000, scoped, tag = 'scratch operand']
  %s0 = inlined_call_operand.hbm [shape: f32[2,8,32], index: 0, kind: input, shape index: {}]
  %s1 = inlined_call_operand.vmem [shape: f32[2,1,8], index: 1, kind: input, shape index: {}]
  %s2 = inlined_call_operand.vmem [shape: f32[1,32], index: 2, kind: input, shape index: {}]
  %s3 = inlined_call_operand.vmem [shape: f32[1,32], index: 3, kind: input, shape index: {}]
  %s4 = inlined_call_operand.hbm [shape: f32[32,96], index: 4, kind: input, shape index: {}]
  %s5 = inlined_call_operand.vmem [shape: f32[1,96], index: 5, kind: input, shape index: {}]
  %s6 = inlined_call_operand.hbm [shape: f32[32,32], index: 6, kind: input, shape index: {}]
  %s7 = inlined_call_operand.vmem [shape: f32[1,32], index: 7, kind: input, shape index: {}]
  %s8 = inlined_call_operand.vmem [shape: f32[1,32], index: 8, kind: input, shape index: {}]
  %s9 = inlined_call_operand.vmem [shape: f32[1,32], index: 9, kind: input, shape index: {}]
  %s10 = inlined_call_operand.hbm [shape: f32[2,8,32], index: 10, kind: output, shape index: {}]
  %s11 = sld [smem:[#allocation0]]
  $region85: #{tpu_custom_call.1} parent=0
    _
  %s13 = ssub.s32 1, %s11
  %s14 = scalar_select 0, %s13, %s11
  $region1: #{tpu_custom_call.1} parent=0
    #allocation3 [shape = 'u8[8192]{0}', space=vmem, size = 0x2000, scoped, tag = 'input window, operand 0']
    #allocation4 [shape = 's32[2]{0}', space=sflag, size = 0x8, scoped, tag = 'scoped memory for tpu_custom_call.1']
    #allocation5 [shape = 's32[2]{0}', space=sflag, size = 0x8, scoped, tag = 'scoped memory for tpu_custom_call.1']
    #allocation6 [shape = 'u8[16384]{0}', space=vmem, size = 0x4000, scoped, tag = 'input window, operand 4, single buffered']
    #allocation7 [shape = 's32[1]{0}', space=sflag, size = 0x4, scoped, tag = 'scoped memory for tpu_custom_call.1']
    #allocation8 [shape = 'u8[16384]{0}', space=vmem, size = 0x4000, scoped, tag = 'input window, operand 6, single buffered']
    #allocation9 [shape = 'u8[8192]{0}', space=vmem, size = 0x2000, scoped, tag = 'output window, operand 0']
    %15 = vsyncpa [#allocation4], 0
    %s16 = scalar_lea.sflag [#allocation4], 1
    %17 = vsyncpa %s16, 0
    %18 = vsyncpa [#allocation7], 0
    %19 = vsyncpa [#allocation5], 0
    %s20 = scalar_lea.sflag [#allocation5], 1
    %21 = vsyncpa %s20, 0
    loop: start=0, step=1, limit=4
    $region2: #{tpu_custom_call.1} parent=1 // loop_pre_header
      _
    $region3: #{tpu_custom_call.1} parent=1 // loop_header
      %s23 = sphi 0, %s27
      %p24 = scmp.ge.s32.totalorder %s23, 4
      %s33 = sphi 0, %s35
      %s36 = sphi 0, %s33
      %s37 = sphi 0, %s36
      %s53 = sphi 0, %s37
      %s59 = sphi 0, %s61
      %s62 = sphi 0, %s59
      %s63 = sphi 0, %s62
      %s79 = sphi 0, %s63
      %s83 = sphi 0, %s83
      %s85 = sphi 0, %s83
      %s86 = sphi 0, %s85
      %s100 = sphi 0, %s86
      %s104 = sphi 0, %s104
      %s106 = sphi 0, %s104
      %s107 = sphi 0, %s106
      %s121 = sphi 0, %s107
      %s125 = sphi 0, %s125
      %s127 = sphi 0, %s125
      %s128 = sphi 0, %s127
      %s142 = sphi 0, %s128
      %s146 = sphi 0, %s146
      %s148 = sphi 0, %s146
      %s149 = sphi 0, %s148
      %s163 = sphi 0, %s149
      %s167 = sphi 0, %s167
      %s169 = sphi 0, %s167
      %s170 = sphi 0, %s169
      %s184 = sphi 0, %s170
      %s188 = sphi 0, %s188
      %s190 = sphi 0, %s188
      %s191 = sphi 0, %s190
      %s205 = sphi 0, %s191
      %s209 = sphi 0, %s209
      %s211 = sphi 0, %s209
      %s212 = sphi 0, %s211
      %s226 = sphi 0, %s212
      %s230 = sphi 0, %s230
      %s232 = sphi 0, %s230
      %s233 = sphi 0, %s232
      %s247 = sphi 0, %s233
      %s253 = sphi 0, %s255
      %s256 = sphi 0, %s253
      %s257 = sphi 0, %s256
      %s273 = sphi 0, %s257
    $region4: #{tpu_custom_call.1} parent=1 // loop_header_branch
      %26 = sbr.rel (%p24) target = $region8
    $region5: #{tpu_custom_call.1} parent=1 // loop_body
      %s28 = ssub.s32 %s23, 1
      %s29 = ssub.s32 %s23, 2
      %s30 = sadd.s32 %s23, 1
      %s31 = ssub.s32 %s23, %s30
      %p32 = scmp.eq.s32.totalorder %s31, 0
      %s34 = sadd.s32 %s33, 1
      %s35 = scalar_select %p32, %s33, %s34
      %p38 = pneg %p32
      %p39 = scmp.eq.s32.totalorder %s23, 1
      %p40 = por %p38, %p39
      %p41 = scmp.ne.s32.totalorder %s33, %s36
      %p42 = scmp.eq.s32.totalorder %s23, 0
      %p43 = por %p41, %p42
      %p44 = scmp.ne.s32.totalorder %s33, %s36
      %p45 = scmp.eq.s32.totalorder %s28, 1
      %p46 = por %p44, %p45
      %p47 = scmp.ne.s32.totalorder %s36, %s37
      %p48 = scmp.eq.s32.totalorder %s28, 0
      %p49 = por %p47, %p48
      %p50 = scmp.ne.s32.totalorder %s36, %s37
      %p51 = scmp.eq.s32.totalorder %s29, 1
      %p52 = por %p50, %p51
      %p54 = scmp.ne.s32.totalorder %s37, %s53
      %p55 = scmp.eq.s32.totalorder %s29, 0
      %p56 = por %p54, %p55
      %s57 = ssub.s32 %s23, %s30
      %p58 = scmp.eq.s32.totalorder %s57, 0
      %s60 = sadd.s32 %s59, 1
      %s61 = scalar_select %p58, %s59, %s60
      %p64 = pneg %p58
      %p65 = scmp.eq.s32.totalorder %s23, 1
      %p66 = por %p64, %p65
      %p67 = scmp.ne.s32.totalorder %s59, %s62
      %p68 = scmp.eq.s32.totalorder %s23, 0
      %p69 = por %p67, %p68
      %p70 = scmp.ne.s32.totalorder %s59, %s62
      %p71 = scmp.eq.s32.totalorder %s28, 1
      %p72 = por %p70, %p71
      %p73 = scmp.ne.s32.totalorder %s62, %s63
      %p74 = scmp.eq.s32.totalorder %s28, 0
      %p75 = por %p73, %p74
      %p76 = scmp.ne.s32.totalorder %s62, %s63
      %p77 = scmp.eq.s32.totalorder %s29, 1
      %p78 = por %p76, %p77
      %p80 = scmp.ne.s32.totalorder %s63, %s79
      %p81 = scmp.eq.s32.totalorder %s29, 0
      %p82 = por %p80, %p81
      %s84 = sadd.s32 %s83, 1
      %p87 = scmp.eq.s32.totalorder %s23, 1
      %p88 = scmp.ne.s32.totalorder %s83, %s85
      %p89 = scmp.eq.s32.totalorder %s23, 0
      %p90 = por %p88, %p89
      %p91 = scmp.ne.s32.totalorder %s83, %s85
      %p92 = scmp.eq.s32.totalorder %s28, 1
      %p93 = por %p91, %p92
      %p94 = scmp.ne.s32.totalorder %s85, %s86
      %p95 = scmp.eq.s32.totalorder %s28, 0
      %p96 = por %p94, %p95
      %p97 = scmp.ne.s32.totalorder %s85, %s86
      %p98 = scmp.eq.s32.totalorder %s29, 1
      %p99 = por %p97, %p98
      %p101 = scmp.ne.s32.totalorder %s86, %s100
      %p102 = scmp.eq.s32.totalorder %s29, 0
      %p103 = por %p101, %p102
      %s105 = sadd.s32 %s104, 1
      %p108 = scmp.eq.s32.totalorder %s23, 1
      %p109 = scmp.ne.s32.totalorder %s104, %s106
      %p110 = scmp.eq.s32.totalorder %s23, 0
      %p111 = por %p109, %p110
      %p112 = scmp.ne.s32.totalorder %s104, %s106
      %p113 = scmp.eq.s32.totalorder %s28, 1
      %p114 = por %p112, %p113
      %p115 = scmp.ne.s32.totalorder %s106, %s107
      %p116 = scmp.eq.s32.totalorder %s28, 0
      %p117 = por %p115, %p116
      %p118 = scmp.ne.s32.totalorder %s106, %s107
      %p119 = scmp.eq.s32.totalorder %s29, 1
      %p120 = por %p118, %p119
      %p122 = scmp.ne.s32.totalorder %s107, %s121
      %p123 = scmp.eq.s32.totalorder %s29, 0
      %p124 = por %p122, %p123
      %s126 = sadd.s32 %s125, 1
      %p129 = scmp.eq.s32.totalorder %s23, 1
      %p130 = scmp.ne.s32.totalorder %s125, %s127
      %p131 = scmp.eq.s32.totalorder %s23, 0
      %p132 = por %p130, %p131
      %p133 = scmp.ne.s32.totalorder %s125, %s127
      %p134 = scmp.eq.s32.totalorder %s28, 1
      %p135 = por %p133, %p134
      %p136 = scmp.ne.s32.totalorder %s127, %s128
      %p137 = scmp.eq.s32.totalorder %s28, 0
      %p138 = por %p136, %p137
      %p139 = scmp.ne.s32.totalorder %s127, %s128
      %p140 = scmp.eq.s32.totalorder %s29, 1
      %p141 = por %p139, %p140
      %p143 = scmp.ne.s32.totalorder %s128, %s142
      %p144 = scmp.eq.s32.totalorder %s29, 0
      %p145 = por %p143, %p144
      %s147 = sadd.s32 %s146, 1
      %p150 = scmp.eq.s32.totalorder %s23, 1
      %p151 = scmp.ne.s32.totalorder %s146, %s148
      %p152 = scmp.eq.s32.totalorder %s23, 0
      %p153 = por %p151, %p152
      %p154 = scmp.ne.s32.totalorder %s146, %s148
      %p155 = scmp.eq.s32.totalorder %s28, 1
      %p156 = por %p154, %p155
      %p157 = scmp.ne.s32.totalorder %s148, %s149
      %p158 = scmp.eq.s32.totalorder %s28, 0
      %p159 = por %p157, %p158
      %p160 = scmp.ne.s32.totalorder %s148, %s149
      %p161 = scmp.eq.s32.totalorder %s29, 1
      %p162 = por %p160, %p161
      %p164 = scmp.ne.s32.totalorder %s149, %s163
      %p165 = scmp.eq.s32.totalorder %s29, 0
      %p166 = por %p164, %p165
      %s168 = sadd.s32 %s167, 1
      %p171 = scmp.eq.s32.totalorder %s23, 1
      %p172 = scmp.ne.s32.totalorder %s167, %s169
      %p173 = scmp.eq.s32.totalorder %s23, 0
      %p174 = por %p172, %p173
      %p175 = scmp.ne.s32.totalorder %s167, %s169
      %p176 = scmp.eq.s32.totalorder %s28, 1
      %p177 = por %p175, %p176
      %p178 = scmp.ne.s32.totalorder %s169, %s170
      %p179 = scmp.eq.s32.totalorder %s28, 0
      %p180 = por %p178, %p179
      %p181 = scmp.ne.s32.totalorder %s169, %s170
      %p182 = scmp.eq.s32.totalorder %s29, 1
      %p183 = por %p181, %p182
      %p185 = scmp.ne.s32.totalorder %s170, %s184
      %p186 = scmp.eq.s32.totalorder %s29, 0
      %p187 = por %p185, %p186
      %s189 = sadd.s32 %s188, 1
      %p192 = scmp.eq.s32.totalorder %s23, 1
      %p193 = scmp.ne.s32.totalorder %s188, %s190
      %p194 = scmp.eq.s32.totalorder %s23, 0
      %p195 = por %p193, %p194
      %p196 = scmp.ne.s32.totalorder %s188, %s190
      %p197 = scmp.eq.s32.totalorder %s28, 1
      %p198 = por %p196, %p197
      %p199 = scmp.ne.s32.totalorder %s190, %s191
      %p200 = scmp.eq.s32.totalorder %s28, 0
      %p201 = por %p199, %p200
      %p202 = scmp.ne.s32.totalorder %s190, %s191
      %p203 = scmp.eq.s32.totalorder %s29, 1
      %p204 = por %p202, %p203
      %p206 = scmp.ne.s32.totalorder %s191, %s205
      %p207 = scmp.eq.s32.totalorder %s29, 0
      %p208 = por %p206, %p207
      %s210 = sadd.s32 %s209, 1
      %p213 = scmp.eq.s32.totalorder %s23, 1
      %p214 = scmp.ne.s32.totalorder %s209, %s211
      %p215 = scmp.eq.s32.totalorder %s23, 0
      %p216 = por %p214, %p215
      %p217 = scmp.ne.s32.totalorder %s209, %s211
      %p218 = scmp.eq.s32.totalorder %s28, 1
      %p219 = por %p217, %p218
      %p220 = scmp.ne.s32.totalorder %s211, %s212
      %p221 = scmp.eq.s32.totalorder %s28, 0
      %p222 = por %p220, %p221
      %p223 = scmp.ne.s32.totalorder %s211, %s212
      %p224 = scmp.eq.s32.totalorder %s29, 1
      %p225 = por %p223, %p224
      %p227 = scmp.ne.s32.totalorder %s212, %s226
      %p228 = scmp.eq.s32.totalorder %s29, 0
      %p229 = por %p227, %p228
      %s231 = sadd.s32 %s230, 1
      %p234 = scmp.eq.s32.totalorder %s23, 1
      %p235 = scmp.ne.s32.totalorder %s230, %s232
      %p236 = scmp.eq.s32.totalorder %s23, 0
      %p237 = por %p235, %p236
      %p238 = scmp.ne.s32.totalorder %s230, %s232
      %p239 = scmp.eq.s32.totalorder %s28, 1
      %p240 = por %p238, %p239
      %p241 = scmp.ne.s32.totalorder %s232, %s233
      %p242 = scmp.eq.s32.totalorder %s28, 0
      %p243 = por %p241, %p242
      %p244 = scmp.ne.s32.totalorder %s232, %s233
      %p245 = scmp.eq.s32.totalorder %s29, 1
      %p246 = por %p244, %p245
      %p248 = scmp.ne.s32.totalorder %s233, %s247
      %p249 = scmp.eq.s32.totalorder %s29, 0
      %p250 = por %p248, %p249
      %s251 = ssub.s32 %s23, %s30
      %p252 = scmp.eq.s32.totalorder %s251, 0
      %s254 = sadd.s32 %s253, 1
      %s255 = scalar_select %p252, %s253, %s254
      %p258 = pneg %p252
      %p259 = scmp.eq.s32.totalorder %s23, 1
      %p260 = por %p258, %p259
      %p261 = scmp.ne.s32.totalorder %s253, %s256
      %p262 = scmp.eq.s32.totalorder %s23, 0
      %p263 = por %p261, %p262
      %p264 = scmp.ne.s32.totalorder %s253, %s256
      %p265 = scmp.eq.s32.totalorder %s28, 1
      %p266 = por %p264, %p265
      %p267 = scmp.ne.s32.totalorder %s256, %s257
      %p268 = scmp.eq.s32.totalorder %s28, 0
      %p269 = por %p267, %p268
      %p270 = scmp.ne.s32.totalorder %s256, %s257
      %p271 = scmp.eq.s32.totalorder %s29, 1
      %p272 = por %p270, %p271
      %p274 = scmp.ne.s32.totalorder %s257, %s273
      %p275 = scmp.eq.s32.totalorder %s29, 0
      %p276 = por %p274, %p275
      %p277 = scmp.le.s32.totalorder 1, %s23
      %p278 = scmp.lt.s32.totalorder %s23, 3
      %p279 = pnand %p277, %p278
      %p280 = pneg %p279
      // Predicated region
      $region9: #{tpu_custom_call.1} parent=5 // pred_check
        _
      $region10: #{tpu_custom_call.1} parent=5 // pred_check_branch
        %282 = sbr.rel (%p279) target = $region12
      $region11: #{tpu_custom_call.1} parent=5 // pred_region
        %s283 = ssub.s32 %s23, 1
        // Predicated region
        $region13: #{tpu_custom_call.1} parent=11 // pred_check
          %p284 = pneg %p96
        $region14: #{tpu_custom_call.1} parent=11 // pred_check_branch
          %286 = sbr.rel (%p284) target = $region16
        $region15: #{tpu_custom_call.1} parent=11 // pred_region
          _
        $region16: #{tpu_custom_call.1} parent=11 // pred_fallthru
          _
        // Predicated region
        $region17: #{tpu_custom_call.1} parent=11 // pred_check
          %p287 = pneg %p117
        $region18: #{tpu_custom_call.1} parent=11 // pred_check_branch
          %289 = sbr.rel (%p287) target = $region20
        $region19: #{tpu_custom_call.1} parent=11 // pred_region
          _
        $region20: #{tpu_custom_call.1} parent=11 // pred_fallthru
          _
        // Predicated region
        $region21: #{tpu_custom_call.1} parent=11 // pred_check
          %p290 = pneg %p138
        $region22: #{tpu_custom_call.1} parent=11 // pred_check_branch
          %292 = sbr.rel (%p290) target = $region24
        $region23: #{tpu_custom_call.1} parent=11 // pred_region
          %s294 = ssub.s32 512, 512
          %295 = vsyncadd [#allocation7], %s294
          %s296 = sshll.u32 [#allocation6], 4
          %s297 = int_to_ptr.vmem [resolvable:$true] %s296
          %302 = dma.hbm_to_vmem [thread:$0]  %s4, 512, %s297, [#allocation7], 128, 128, 8
        $region24: #{tpu_custom_call.1} parent=11 // pred_fallthru
          _
        // Predicated region
        $region25: #{tpu_custom_call.1} parent=11 // pred_check
          %p303 = pneg %p159
        $region26: #{tpu_custom_call.1} parent=11 // pred_check_branch
          %305 = sbr.rel (%p303) target = $region28
        $region27: #{tpu_custom_call.1} parent=11 // pred_region
          _
        $region28: #{tpu_custom_call.1} parent=11 // pred_fallthru
          _
        // Predicated region
        $region29: #{tpu_custom_call.1} parent=11 // pred_check
          %p306 = pneg %p180
        $region30: #{tpu_custom_call.1} parent=11 // pred_check_branch
          %308 = sbr.rel (%p306) target = $region32
        $region31: #{tpu_custom_call.1} parent=11 // pred_region
          %s310 = ssub.s32 512, 512
          %311 = vsyncadd [#allocation7], %s310
          %s312 = sshll.u32 [#allocation8], 4
          %s313 = int_to_ptr.vmem [resolvable:$true] %s312
          %318 = dma.hbm_to_vmem [thread:$0]  %s6, 512, %s313, [#allocation7], 128, 128, 8
        $region32: #{tpu_custom_call.1} parent=11 // pred_fallthru
          _
        // Predicated region
        $region33: #{tpu_custom_call.1} parent=11 // pred_check
          %p319 = pneg %p201
        $region34: #{tpu_custom_call.1} parent=11 // pred_check_branch
          %321 = sbr.rel (%p319) target = $region36
        $region35: #{tpu_custom_call.1} parent=11 // pred_region
          _
        $region36: #{tpu_custom_call.1} parent=11 // pred_fallthru
          _
        // Predicated region
        $region37: #{tpu_custom_call.1} parent=11 // pred_check
          %p322 = pneg %p222
        $region38: #{tpu_custom_call.1} parent=11 // pred_check_branch
          %324 = sbr.rel (%p322) target = $region40
        $region39: #{tpu_custom_call.1} parent=11 // pred_region
          _
        $region40: #{tpu_custom_call.1} parent=11 // pred_fallthru
          _
        // Predicated region
        $region41: #{tpu_custom_call.1} parent=11 // pred_check
          %p325 = pneg %p243
        $region42: #{tpu_custom_call.1} parent=11 // pred_check_branch
          %327 = sbr.rel (%p325) target = $region44
        $region43: #{tpu_custom_call.1} parent=11 // pred_region
          _
        $region44: #{tpu_custom_call.1} parent=11 // pred_fallthru
          _
      $region12: #{tpu_custom_call.1} parent=5 // pred_fallthru
        _
      %p328 = scmp.lt.s32.totalorder %s23, 2
      // Predicated region
      $region45: #{tpu_custom_call.1} parent=5 // pred_check
        %p329 = pneg %p328
      $region46: #{tpu_custom_call.1} parent=5 // pred_check_branch
        %331 = sbr.rel (%p329) target = $region48
      $region47: #{tpu_custom_call.1} parent=5 // pred_region
        // Predicated region
        $region49: #{tpu_custom_call.1} parent=47 // pred_check
          %p332 = pneg %p43
        $region50: #{tpu_custom_call.1} parent=47 // pred_check_branch
          %334 = sbr.rel (%p332) target = $region52
        $region51: #{tpu_custom_call.1} parent=47 // pred_region
          %s335 = sand.u32 %s33, 1
          %s336 = scalar_lea.sflag [#allocation4], %s335
          %s337 = sand.u32 %s33, 1
          %s338 = smul.addr %s337, 8
          %s339 = scalar_lea.vmem [#allocation3], %s338
          %s341 = ssub.s32 128, 128
          %342 = vsyncadd %s336, %s341
          %s343 = smul.addr %s23, 128
          %s344 = scalar_lea.hbm %s0, %s343
          %s346 = sshll.u32 %s339, 4
          %s347 = int_to_ptr.vmem [resolvable:$true] %s346
          %349 = dma.hbm_to_vmem [thread:$0]  %s344, 128, %s347, %s336
        $region52: #{tpu_custom_call.1} parent=47 // pred_fallthru
          _
        // Predicated region
        $region53: #{tpu_custom_call.1} parent=47 // pred_check
          %p350 = pneg %p69
        $region54: #{tpu_custom_call.1} parent=47 // pred_check_branch
          %352 = sbr.rel (%p350) target = $region56
        $region55: #{tpu_custom_call.1} parent=47 // pred_region
          %p353 = scmp.lt.s32.totalorder %s23, 1
          %s354 = scalar_select %p353, %s23, 1
          %s355 = scalar_lea.vmem %s1, %s354
        $region56: #{tpu_custom_call.1} parent=47 // pred_fallthru
          _
      $region48: #{tpu_custom_call.1} parent=5 // pred_fallthru
        _
      %p356 = scmp.le.s32.totalorder 1, %s23
      %p357 = scmp.lt.s32.totalorder %s23, 3
      %p358 = pnand %p356, %p357
      %p359 = pneg %p358
      // Predicated region
      $region57: #{tpu_custom_call.1} parent=5 // pred_check
        _
      $region58: #{tpu_custom_call.1} parent=5 // pred_check_branch
        %361 = sbr.rel (%p358) target = $region60
      $region59: #{tpu_custom_call.1} parent=5 // pred_region
        %s362 = ssub.s32 %s23, 1
        %s363 = sand.u32 %s36, 1
        %s364 = scalar_lea.sflag [#allocation4], %s363
        %s365 = sand.u32 %s36, 1
        %s366 = smul.addr %s365, 8
        %s367 = scalar_lea.vmem [#allocation3], %s366
        // Predicated region
        $region61: #{tpu_custom_call.1} parent=59 // pred_check
          %p368 = pneg %p49
        $region62: #{tpu_custom_call.1} parent=59 // pred_check_branch
          %370 = sbr.rel (%p368) target = $region64
        $region63: #{tpu_custom_call.1} parent=59 // pred_region
          %371 = dma.done %s364, 128
        $region64: #{tpu_custom_call.1} parent=59 // pred_fallthru
          _
        // Predicated region
        $region65: #{tpu_custom_call.1} parent=59 // pred_check
          %p372 = pneg %p138
        $region66: #{tpu_custom_call.1} parent=59 // pred_check_branch
          %374 = sbr.rel (%p372) target = $region68
        $region67: #{tpu_custom_call.1} parent=59 // pred_region
          %375 = dma.done [#allocation7], 512
        $region68: #{tpu_custom_call.1} parent=59 // pred_fallthru
          _
        // Predicated region
        $region69: #{tpu_custom_call.1} parent=59 // pred_check
          %p376 = pneg %p180
        $region70: #{tpu_custom_call.1} parent=59 // pred_check_branch
          %378 = sbr.rel (%p376) target = $region72
        $region71: #{tpu_custom_call.1} parent=59 // pred_region
          %379 = dma.done [#allocation7], 512
        $region72: #{tpu_custom_call.1} parent=59 // pred_fallthru
          _
        %s380 = sand.u32 %s36, 1
        %s381 = scalar_lea.sflag [#allocation4], %s380
        %s382 = sand.u32 %s36, 1
        %s383 = smul.addr %s382, 8
        %s384 = scalar_lea.vmem [#allocation3], %s383
        %p385 = pneg %p49
        %p386 = pneg %p46
        %p387 = scmp.lt.s32.totalorder %s28, 1
        %s388 = scalar_select %p387, %s28, 1
        %s389 = scalar_lea.vmem %s1, %s388
        %p390 = pneg %p75
        %p391 = pneg %p72
        %p392 = pneg %p96
        %p393 = pneg %p93
        %p394 = pneg %p117
        %p395 = pneg %p114
        %p396 = pneg %p138
        %p397 = pneg %p135
        %p398 = pneg %p159
        %p399 = pneg %p156
        %p400 = pneg %p180
        %p401 = pneg %p177
        %p402 = pneg %p201
        %p403 = pneg %p198
        %p404 = pneg %p222
        %p405 = pneg %p219
        %p406 = pneg %p243
        %p407 = pneg %p240
        %p408 = pneg %p269
        %p409 = pneg %p266
        %s410 = sand.u32 %s256, 1
        %s411 = scalar_lea.sflag [#allocation5], %s410
        %s412 = sand.u32 %s256, 1
        %s413 = smul.addr %s412, 8
        %s414 = scalar_lea.vmem [#allocation9], %s413
        %p415 = scmp.lt.s32.totalorder %s28, 1
        %s416 = scalar_select %p415, %s28, 1
        %s417 = scalar_lea.vmem %s1, %s416
        %v418 = vld [vmem:[%s367] sm:$0xff]
        %v419 = vld [vmem:[%s417] sm:$0x1]
        %v420 = vld [vmem:[%s2] sm:$0x1]
        %v421 = vld [vmem:[%s3] sm:$0x1]
        %vm422 = vcmask 261120
        %v423 = vsel %vm422, %v418, 0.0
        %424 = vadd.xlane.f32.xlu0 %v423
        %v425 = vpop.xlane.xlu0 %424
        %v426 = vrcp.pop 32.0
        %v427 = vmul.f32 %v425, %v426
        %v428 = vsub.f32 %v418, %v427
        %v429 = vmul.f32 %v428, %v428
        %v430 = vsel %vm422, %v429, 0.0
        %431 = vadd.xlane.f32.xlu0 %v430
        %v432 = vpop.xlane.xlu0 %431
        %v433 = vmul.f32 %v432, %v426
        %v434 = vadd.f32 %v433, 1e-05
        %v435 = vrsqrt.pop %v434
        %v436 = vmul.f32 %v428, %v435
        %v438 = vlaneseq
        %v439 = vshrl.u32 %v438, 7
        %v440 = vsub.s32 0, %v439
        %v441 = vrot.slane %v420, %v440
        %v443 = vmul.f32 %v436, %v441
        %v445 = vlaneseq
        %v446 = vshrl.u32 %v445, 7
        %v447 = vsub.s32 0, %v446
        %v448 = vrot.slane %v421, %v447
        %v450 = vadd.f32 %v443, %v448
        %v451 = vld [vmem:[#allocation6] sm:$0xff]
        %v452 = vld [vmem:[#allocation6 + $0x8] sm:$0xff]
        %v453 = vld [vmem:[#allocation6 + $0x10] sm:$0xff]
        %v454 = vld [vmem:[#allocation6 + $0x18] sm:$0xff]
        %v455 = vld [vmem:[%s5] sm:$0x1]
        %v457 = vlaneseq
        %v458 = vshrl.u32 %v457, 7
        %v459 = vsub.s32 0, %v458
        %v460 = vrot.slane %v455, %v459
        %v463 = vsel %vm422, %v450, 0
        %465 = vmatprep.subr.mxu0 0.0
        %466 = vmatpush1.msra.mxu0 %v451
        %467 = vmatprep.subr.mxu0 0.0
        %468 = vmatpush1.msra.mxu0 %v452
        %469 = vmatprep.subr.mxu0 0.0
        %470 = vmatpush1.msra.mxu0 %v453
        %471 = vmatprep.subr.mxu0 0.0
        %472 = vmatpush1.msra.mxu0 %v454
        %473 = vmatprep.subr.mxu0 0.0
        %474 = vmatpush1.msra.mxu0 0.0
        %475 = vmatprep.subr.mxu0 0.0
        %476 = vmatpush1.msra.mxu0 0.0
        %477 = vmatprep.subr.mxu0 0.0
        %478 = vmatpush1.msra.mxu0 0.0
        %479 = vmatprep.subr.mxu0 0.0
        %480 = vmatpush1.msra.mxu0 0.0
        %481 = vmatprep.subr.mxu0 0.0
        %482 = vmatpush1.msra.mxu0 0.0
        %483 = vmatprep.subr.mxu0 0.0
        %484 = vmatpush1.msra.mxu0 0.0
        %485 = vmatprep.subr.mxu0 0.0
        %486 = vmatpush1.msra.mxu0 0.0
        %487 = vmatprep.subr.mxu0 0.0
        %488 = vmatpush1.msra.mxu0 0.0
        %489 = vmatprep.subr.mxu0 0.0
        %490 = vmatpush1.msra.mxu0 0.0
        %491 = vmatprep.subr.mxu0 0.0
        %492 = vmatpush1.msra.mxu0 0.0
        %493 = vmatprep.subr.mxu0 0.0
        %494 = vmatpush1.msra.mxu0 0.0
        %495 = vmatprep.subr.mxu0 0.0
        %496 = vmatpush1.msra.mxu0 0.0
        %497 = vmatprep.subr.mxu0 0.0
        %498 = vmatpush1.msra.mxu0 0.0
        %499 = vmatprep.subr.mxu0 0.0
        %500 = vmatpush1.msra.mxu0 0.0
        %501 = vmatprep.subr.mxu0 0.0
        %502 = vmatpush1.msra.mxu0 0.0
        %503 = vmatprep.subr.mxu0 0.0
        %504 = vmatpush1.msra.mxu0 0.0
        %505 = vmatprep.subr.mxu0 0.0
        %506 = vmatpush1.msra.mxu0 0.0
        %507 = vmatprep.subr.mxu0 0.0
        %508 = vmatpush1.msra.mxu0 0.0
        %509 = vmatprep.subr.mxu0 0.0
        %510 = vmatpush1.msra.mxu0 0.0
        %511 = vmatprep.subr.mxu0 0.0
        %512 = vmatpush1.msra.mxu0 0.0
        %513 = vmatprep.subr.mxu0 0.0
        %514 = vmatpush1.msra.mxu0 0.0
        %515 = vmatprep.subr.mxu0 0.0
        %516 = vmatpush1.msra.mxu0 0.0
        %517 = vmatprep.subr.mxu0 0.0
        %518 = vmatpush1.msra.mxu0 0.0
        %519 = vmatprep.subr.mxu0 0.0
        %520 = vmatpush1.msra.mxu0 0.0
        %521 = vmatprep.subr.mxu0 0.0
        %522 = vmatpush1.msra.mxu0 0.0
        %523 = vmatprep.subr.mxu0 0.0
        %524 = vmatpush1.msra.mxu0 0.0
        %525 = vmatprep.subr.mxu0 0.0
        %526 = vmatpush1.msra.mxu0 0.0
        %527 = vmatprep.subr.mxu0 0.0
        %528 = vmatpush1.msra.mxu0 0.0
        %529 = vmatprep.mubr.f32.mxu0 0.0
        %530 = vmatmul.mubr.f32.gmra.mrb[0].mxu0 %v463
        %v531 = vpop.f32.mrb[0].mxu0
        %v532 = vadd.f32 %v460, %v531
        %v533 = vpop.f32.mrb[0].mxu0
        %534 = vdwg.mxu0
        %v535 = vsub.f32 1.0, %v419
        %v536 = vmul.f32 %v535, 1e+10
        %538 = vrot.lane.b32.xlu0 %v532, 96
        %v539 = vpop.permute.xlu0 %538
        %vm540 = vcmask 64512
        %v541 = vsel %vm540, %v532, 0
        %v543 = vsel %vm540, %v539, 0
        %545 = vmatprep.subr.mxu0 0.0
        %546 = vmatpush1.xpose.msra.mxu0 %v543
        %547 = vmatprep.subr.mxu0 0.0
        %548 = vmatpush1.xpose.msra.mxu0 0.0
        %549 = vmatprep.subr.mxu0 0.0
        %550 = vmatpush1.xpose.msra.mxu0 0.0
        %551 = vmatprep.subr.mxu0 0.0
        %552 = vmatpush1.xpose.msra.mxu0 0.0
        %553 = vmatprep.subr.mxu0 0.0
        %554 = vmatpush1.xpose.msra.mxu0 0.0
        %555 = vmatprep.subr.mxu0 0.0
        %556 = vmatpush1.xpose.msra.mxu0 0.0
        %557 = vmatprep.subr.mxu0 0.0
        %558 = vmatpush1.xpose.msra.mxu0 0.0
        %559 = vmatprep.subr.mxu0 0.0
        %560 = vmatpush1.xpose.msra.mxu0 0.0
        %561 = vmatprep.subr.mxu0 0.0
        %562 = vmatpush1.xpose.msra.mxu0 0.0
        %563 = vmatprep.subr.mxu0 0.0
        %564 = vmatpush1.xpose.msra.mxu0 0.0
        %565 = vmatprep.subr.mxu0 0.0
        %566 = vmatpush1.xpose.msra.mxu0 0.0
        %567 = vmatprep.subr.mxu0 0.0
        %568 = vmatpush1.xpose.msra.mxu0 0.0
        %569 = vmatprep.subr.mxu0 0.0
        %570 = vmatpush1.xpose.msra.mxu0 0.0
        %571 = vmatprep.subr.mxu0 0.0
        %572 = vmatpush1.xpose.msra.mxu0 0.0
        %573 = vmatprep.subr.mxu0 0.0
        %574 = vmatpush1.xpose.msra.mxu0 0.0
        %575 = vmatprep.subr.mxu0 0.0
        %576 = vmatpush1.xpose.msra.mxu0 0.0
        %577 = vmatprep.subr.mxu0 0.0
        %578 = vmatpush1.xpose.msra.mxu0 0.0
        %579 = vmatprep.subr.mxu0 0.0
        %580 = vmatpush1.xpose.msra.mxu0 0.0
        %581 = vmatprep.subr.mxu0 0.0
        %582 = vmatpush1.xpose.msra.mxu0 0.0
        %583 = vmatprep.subr.mxu0 0.0
        %584 = vmatpush1.xpose.msra.mxu0 0.0
        %585 = vmatprep.subr.mxu0 0.0
        %586 = vmatpush1.xpose.msra.mxu0 0.0
        %587 = vmatprep.subr.mxu0 0.0
        %588 = vmatpush1.xpose.msra.mxu0 0.0
        %589 = vmatprep.subr.mxu0 0.0
        %590 = vmatpush1.xpose.msra.mxu0 0.0
        %591 = vmatprep.subr.mxu0 0.0
        %592 = vmatpush1.xpose.msra.mxu0 0.0
        %593 = vmatprep.subr.mxu0 0.0
        %594 = vmatpush1.xpose.msra.mxu0 0.0
        %595 = vmatprep.subr.mxu0 0.0
        %596 = vmatpush1.xpose.msra.mxu0 0.0
        %597 = vmatprep.subr.mxu0 0.0
        %598 = vmatpush1.xpose.msra.mxu0 0.0
        %599 = vmatprep.subr.mxu0 0.0
        %600 = vmatpush1.xpose.msra.mxu0 0.0
        %601 = vmatprep.subr.mxu0 0.0
        %602 = vmatpush1.xpose.msra.mxu0 0.0
        %603 = vmatprep.subr.mxu0 0.0
        %604 = vmatpush1.xpose.msra.mxu0 0.0
        %605 = vmatprep.subr.mxu0 0.0
        %606 = vmatpush1.xpose.msra.mxu0 0.0
        %607 = vmatprep.subr.mxu0 0.0
        %608 = vmatpush1.xpose.msra.mxu0 0.0
        %609 = vmatprep.mubr.f32.mxu0 0.0
        %610 = vmatmul.mubr.f32.gmra.mrb[0].mxu0 %v541
        %v611 = vpop.f32.mrb[0].mxu0
        %v612 = vadd.f32 0.0, %v611
        %v613 = vpop.f32.mrb[0].mxu0
        %614 = vdwg.mxu0
        %v615 = vmul.f32 %v612, 0.35355338
        %v617 = vlaneseq
        %v618 = vshrl.u32 %v617, 7
        %v619 = vsub.s32 0, %v618
        %v620 = vrot.slane %v536, %v619
        %v622 = vsub.f32 %v615, %v620
        %v623 = vsel %vm540, %v622, -inf
        %624 = vmax.xlane.f32.xlu0 %v623
        %v625 = vpop.xlane.xlu0 %624
        %v626 = vsub.f32 %v622, %v625
        %v627 = vmul.f32 %v626, 1.442695
        %v628 = vpow.pop %v627
        %v629 = vsel %vm540, %v628, 0.0
        %630 = vadd.xlane.f32.xlu0 %v629
        %v631 = vpop.xlane.xlu0 %630
        %v632 = vrcp.pop %v631
        %v634 = vlaneseq
        %v635 = vshrl.u32 %v634, 7
        %v636 = vsub.s32 0, %v635
        %v637 = vrot.slane %v419, %v636
        %v639 = vmul.f32 %v628, %v637
        %v640 = vmul.f32 %v639, %v632
        %641 = vrot.lane.b32.xlu0 %v532, 64
        %v642 = vpop.permute.xlu0 %641
        %v645 = vsel %vm540, %v640, 0
        %647 = vmatprep.subr.mxu0 0.0
        %648 = vmatpush1.msra.mxu0 %v642
        %649 = vmatprep.subr.mxu0 0.0
        %650 = vmatpush1.msra.mxu0 0.0
        %651 = vmatprep.subr.mxu0 0.0
        %652 = vmatpush1.msra.mxu0 0.0
        %653 = vmatprep.subr.mxu0 0.0
        %654 = vmatpush1.msra.mxu0 0.0
        %655 = vmatprep.subr.mxu0 0.0
        %656 = vmatpush1.msra.mxu0 0.0
        %657 = vmatprep.subr.mxu0 0.0
        %658 = vmatpush1.msra.mxu0 0.0
        %659 = vmatprep.subr.mxu0 0.0
        %660 = vmatpush1.msra.mxu0 0.0
        %661 = vmatprep.subr.mxu0 0.0
        %662 = vmatpush1.msra.mxu0 0.0
        %663 = vmatprep.subr.mxu0 0.0
        %664 = vmatpush1.msra.mxu0 0.0
        %665 = vmatprep.subr.mxu0 0.0
        %666 = vmatpush1.msra.mxu0 0.0
        %667 = vmatprep.subr.mxu0 0.0
        %668 = vmatpush1.msra.mxu0 0.0
        %669 = vmatprep.subr.mxu0 0.0
        %670 = vmatpush1.msra.mxu0 0.0
        %671 = vmatprep.subr.mxu0 0.0
        %672 = vmatpush1.msra.mxu0 0.0
        %673 = vmatprep.subr.mxu0 0.0
        %674 = vmatpush1.msra.mxu0 0.0
        %675 = vmatprep.subr.mxu0 0.0
        %676 = vmatpush1.msra.mxu0 0.0
        %677 = vmatprep.subr.mxu0 0.0
        %678 = vmatpush1.msra.mxu0 0.0
        %679 = vmatprep.subr.mxu0 0.0
        %680 = vmatpush1.msra.mxu0 0.0
        %681 = vmatprep.subr.mxu0 0.0
        %682 = vmatpush1.msra.mxu0 0.0
        %683 = vmatprep.subr.mxu0 0.0
        %684 = vmatpush1.msra.mxu0 0.0
        %685 = vmatprep.subr.mxu0 0.0
        %686 = vmatpush1.msra.mxu0 0.0
        %687 = vmatprep.subr.mxu0 0.0
        %688 = vmatpush1.msra.mxu0 0.0
        %689 = vmatprep.subr.mxu0 0.0
        %690 = vmatpush1.msra.mxu0 0.0
        %691 = vmatprep.subr.mxu0 0.0
        %692 = vmatpush1.msra.mxu0 0.0
        %693 = vmatprep.subr.mxu0 0.0
        %694 = vmatpush1.msra.mxu0 0.0
        %695 = vmatprep.subr.mxu0 0.0
        %696 = vmatpush1.msra.mxu0 0.0
        %697 = vmatprep.subr.mxu0 0.0
        %698 = vmatpush1.msra.mxu0 0.0
        %699 = vmatprep.subr.mxu0 0.0
        %700 = vmatpush1.msra.mxu0 0.0
        %701 = vmatprep.subr.mxu0 0.0
        %702 = vmatpush1.msra.mxu0 0.0
        %703 = vmatprep.subr.mxu0 0.0
        %704 = vmatpush1.msra.mxu0 0.0
        %705 = vmatprep.subr.mxu0 0.0
        %706 = vmatpush1.msra.mxu0 0.0
        %707 = vmatprep.subr.mxu0 0.0
        %708 = vmatpush1.msra.mxu0 0.0
        %709 = vmatprep.subr.mxu0 0.0
        %710 = vmatpush1.msra.mxu0 0.0
        %711 = vmatprep.mubr.f32.mxu0 0.0
        %712 = vmatmul.mubr.f32.gmra.mrb[0].mxu0 %v645
        %v713 = vpop.f32.mrb[0].mxu0
        %v714 = vadd.f32 0.0, %v713
        %v715 = vpop.f32.mrb[0].mxu0
        %716 = vdwg.mxu0
        %717 = vst.msk [vmem:[#allocation2] sm:$0xff] %vm540, %v714
        %718 = vrot.lane.b32.xlu0 %v532, 120
        %v719 = vpop.permute.xlu0 %718
        %720 = vrot.lane.b32.xlu0 %v532, 88
        %v721 = vpop.permute.xlu0 %720
        %v722 = vsel %vm540, %v719, 0
        %v724 = vsel %vm540, %v721, 0
        %726 = vmatprep.subr.mxu0 0.0
        %727 = vmatpush1.xpose.msra.mxu0 %v724
        %728 = vmatprep.subr.mxu0 0.0
        %729 = vmatpush1.xpose.msra.mxu0 0.0
        %730 = vmatprep.subr.mxu0 0.0
        %731 = vmatpush1.xpose.msra.mxu0 0.0
        %732 = vmatprep.subr.mxu0 0.0
        %733 = vmatpush1.xpose.msra.mxu0 0.0
        %734 = vmatprep.subr.mxu0 0.0
        %735 = vmatpush1.xpose.msra.mxu0 0.0
        %736 = vmatprep.subr.mxu0 0.0
        %737 = vmatpush1.xpose.msra.mxu0 0.0
        %738 = vmatprep.subr.mxu0 0.0
        %739 = vmatpush1.xpose.msra.mxu0 0.0
        %740 = vmatprep.subr.mxu0 0.0
        %741 = vmatpush1.xpose.msra.mxu0 0.0
        %742 = vmatprep.subr.mxu0 0.0
        %743 = vmatpush1.xpose.msra.mxu0 0.0
        %744 = vmatprep.subr.mxu0 0.0
        %745 = vmatpush1.xpose.msra.mxu0 0.0
        %746 = vmatprep.subr.mxu0 0.0
        %747 = vmatpush1.xpose.msra.mxu0 0.0
        %748 = vmatprep.subr.mxu0 0.0
        %749 = vmatpush1.xpose.msra.mxu0 0.0
        %750 = vmatprep.subr.mxu0 0.0
        %751 = vmatpush1.xpose.msra.mxu0 0.0
        %752 = vmatprep.subr.mxu0 0.0
        %753 = vmatpush1.xpose.msra.mxu0 0.0
        %754 = vmatprep.subr.mxu0 0.0
        %755 = vmatpush1.xpose.msra.mxu0 0.0
        %756 = vmatprep.subr.mxu0 0.0
        %757 = vmatpush1.xpose.msra.mxu0 0.0
        %758 = vmatprep.subr.mxu0 0.0
        %759 = vmatpush1.xpose.msra.mxu0 0.0
        %760 = vmatprep.subr.mxu0 0.0
        %761 = vmatpush1.xpose.msra.mxu0 0.0
        %762 = vmatprep.subr.mxu0 0.0
        %763 = vmatpush1.xpose.msra.mxu0 0.0
        %764 = vmatprep.subr.mxu0 0.0
        %765 = vmatpush1.xpose.msra.mxu0 0.0
        %766 = vmatprep.subr.mxu0 0.0
        %767 = vmatpush1.xpose.msra.mxu0 0.0
        %768 = vmatprep.subr.mxu0 0.0
        %769 = vmatpush1.xpose.msra.mxu0 0.0
        %770 = vmatprep.subr.mxu0 0.0
        %771 = vmatpush1.xpose.msra.mxu0 0.0
        %772 = vmatprep.subr.mxu0 0.0
        %773 = vmatpush1.xpose.msra.mxu0 0.0
        %774 = vmatprep.subr.mxu0 0.0
        %775 = vmatpush1.xpose.msra.mxu0 0.0
        %776 = vmatprep.subr.mxu0 0.0
        %777 = vmatpush1.xpose.msra.mxu0 0.0
        %778 = vmatprep.subr.mxu0 0.0
        %779 = vmatpush1.xpose.msra.mxu0 0.0
        %780 = vmatprep.subr.mxu0 0.0
        %781 = vmatpush1.xpose.msra.mxu0 0.0
        %782 = vmatprep.subr.mxu0 0.0
        %783 = vmatpush1.xpose.msra.mxu0 0.0
        %784 = vmatprep.subr.mxu0 0.0
        %785 = vmatpush1.xpose.msra.mxu0 0.0
        %786 = vmatprep.subr.mxu0 0.0
        %787 = vmatpush1.xpose.msra.mxu0 0.0
        %788 = vmatprep.subr.mxu0 0.0
        %789 = vmatpush1.xpose.msra.mxu0 0.0
        %790 = vmatprep.mubr.f32.mxu0 0.0
        %791 = vmatmul.mubr.f32.gmra.mrb[0].mxu0 %v722
        %v792 = vpop.f32.mrb[0].mxu0
        %v793 = vadd.f32 0.0, %v792
        %v794 = vpop.f32.mrb[0].mxu0
        %795 = vdwg.mxu0
        %v796 = vmul.f32 %v793, 0.35355338
        %v797 = vsub.f32 %v796, %v620
        %v798 = vsel %vm540, %v797, -inf
        %799 = vmax.xlane.f32.xlu0 %v798
        %v800 = vpop.xlane.xlu0 %799
        %v801 = vsub.f32 %v797, %v800
        %v802 = vmul.f32 %v801, 1.442695
        %v803 = vpow.pop %v802
        %v804 = vsel %vm540, %v803, 0.0
        %805 = vadd.xlane.f32.xlu0 %v804
        %v806 = vpop.xlane.xlu0 %805
        %v807 = vrcp.pop %v806
        %v808 = vmul.f32 %v803, %v637
        %v809 = vmul.f32 %v808, %v807
        %810 = vrot.lane.b32.xlu0 %v532, 56
        %v811 = vpop.permute.xlu0 %810
        %v814 = vsel %vm540, %v809, 0
        %816 = vmatprep.subr.mxu0 0.0
        %817 = vmatpush1.msra.mxu0 %v811
        %818 = vmatprep.subr.mxu0 0.0
        %819 = vmatpush1.msra.mxu0 0.0
        %820 = vmatprep.subr.mxu0 0.0
        %821 = vmatpush1.msra.mxu0 0.0
        %822 = vmatprep.subr.mxu0 0.0
        %823 = vmatpush1.msra.mxu0 0.0
        %824 = vmatprep.subr.mxu0 0.0
        %825 = vmatpush1.msra.mxu0 0.0
        %826 = vmatprep.subr.mxu0 0.0
        %827 = vmatpush1.msra.mxu0 0.0
        %828 = vmatprep.subr.mxu0 0.0
        %829 = vmatpush1.msra.mxu0 0.0
        %830 = vmatprep.subr.mxu0 0.0
        %831 = vmatpush1.msra.mxu0 0.0
        %832 = vmatprep.subr.mxu0 0.0
        %833 = vmatpush1.msra.mxu0 0.0
        %834 = vmatprep.subr.mxu0 0.0
        %835 = vmatpush1.msra.mxu0 0.0
        %836 = vmatprep.subr.mxu0 0.0
        %837 = vmatpush1.msra.mxu0 0.0
        %838 = vmatprep.subr.mxu0 0.0
        %839 = vmatpush1.msra.mxu0 0.0
        %840 = vmatprep.subr.mxu0 0.0
        %841 = vmatpush1.msra.mxu0 0.0
        %842 = vmatprep.subr.mxu0 0.0
        %843 = vmatpush1.msra.mxu0 0.0
        %844 = vmatprep.subr.mxu0 0.0
        %845 = vmatpush1.msra.mxu0 0.0
        %846 = vmatprep.subr.mxu0 0.0
        %847 = vmatpush1.msra.mxu0 0.0
        %848 = vmatprep.subr.mxu0 0.0
        %849 = vmatpush1.msra.mxu0 0.0
        %850 = vmatprep.subr.mxu0 0.0
        %851 = vmatpush1.msra.mxu0 0.0
        %852 = vmatprep.subr.mxu0 0.0
        %853 = vmatpush1.msra.mxu0 0.0
        %854 = vmatprep.subr.mxu0 0.0
        %855 = vmatpush1.msra.mxu0 0.0
        %856 = vmatprep.subr.mxu0 0.0
        %857 = vmatpush1.msra.mxu0 0.0
        %858 = vmatprep.subr.mxu0 0.0
        %859 = vmatpush1.msra.mxu0 0.0
        %860 = vmatprep.subr.mxu0 0.0
        %861 = vmatpush1.msra.mxu0 0.0
        %862 = vmatprep.subr.mxu0 0.0
        %863 = vmatpush1.msra.mxu0 0.0
        %864 = vmatprep.subr.mxu0 0.0
        %865 = vmatpush1.msra.mxu0 0.0
        %866 = vmatprep.subr.mxu0 0.0
        %867 = vmatpush1.msra.mxu0 0.0
        %868 = vmatprep.subr.mxu0 0.0
        %869 = vmatpush1.msra.mxu0 0.0
        %870 = vmatprep.subr.mxu0 0.0
        %871 = vmatpush1.msra.mxu0 0.0
        %872 = vmatprep.subr.mxu0 0.0
        %873 = vmatpush1.msra.mxu0 0.0
        %874 = vmatprep.subr.mxu0 0.0
        %875 = vmatpush1.msra.mxu0 0.0
        %876 = vmatprep.subr.mxu0 0.0
        %877 = vmatpush1.msra.mxu0 0.0
        %878 = vmatprep.subr.mxu0 0.0
        %879 = vmatpush1.msra.mxu0 0.0
        %880 = vmatprep.mubr.f32.mxu0 0.0
        %881 = vmatmul.mubr.f32.gmra.mrb[0].mxu0 %v814
        %v882 = vpop.f32.mrb[0].mxu0
        %v883 = vadd.f32 0.0, %v882
        %v884 = vpop.f32.mrb[0].mxu0
        %885 = vdwg.mxu0
        %887 = vrot.lane.b32.xlu0 %v883, 8
        %v888 = vpop.permute.xlu0 %887
        %vm890 = vcmask 130112
        %891 = vst.msk [vmem:[#allocation2] sm:$0xff] %vm890, %v888
        %892 = vrot.lane.b32.xlu0 %v532, 112
        %v893 = vpop.permute.xlu0 %892
        %894 = vrot.lane.b32.xlu0 %v532, 80
        %v895 = vpop.permute.xlu0 %894
        %v896 = vsel %vm540, %v893, 0
        %v898 = vsel %vm540, %v895, 0
        %900 = vmatprep.subr.mxu0 0.0
        %901 = vmatpush1.xpose.msra.mxu0 %v898
        %902 = vmatprep.subr.mxu0 0.0
        %903 = vmatpush1.xpose.msra.mxu0 0.0
        %904 = vmatprep.subr.mxu0 0.0
        %905 = vmatpush1.xpose.msra.mxu0 0.0
        %906 = vmatprep.subr.mxu0 0.0
        %907 = vmatpush1.xpose.msra.mxu0 0.0
        %908 = vmatprep.subr.mxu0 0.0
        %909 = vmatpush1.xpose.msra.mxu0 0.0
        %910 = vmatprep.subr.mxu0 0.0
        %911 = vmatpush1.xpose.msra.mxu0 0.0
        %912 = vmatprep.subr.mxu0 0.0
        %913 = vmatpush1.xpose.msra.mxu0 0.0
        %914 = vmatprep.subr.mxu0 0.0
        %915 = vmatpush1.xpose.msra.mxu0 0.0
        %916 = vmatprep.subr.mxu0 0.0
        %917 = vmatpush1.xpose.msra.mxu0 0.0
        %918 = vmatprep.subr.mxu0 0.0
        %919 = vmatpush1.xpose.msra.mxu0 0.0
        %920 = vmatprep.subr.mxu0 0.0
        %921 = vmatpush1.xpose.msra.mxu0 0.0
        %922 = vmatprep.subr.mxu0 0.0
        %923 = vmatpush1.xpose.msra.mxu0 0.0
        %924 = vmatprep.subr.mxu0 0.0
        %925 = vmatpush1.xpose.msra.mxu0 0.0
        %926 = vmatprep.subr.mxu0 0.0
        %927 = vmatpush1.xpose.msra.mxu0 0.0
        %928 = vmatprep.subr.mxu0 0.0
        %929 = vmatpush1.xpose.msra.mxu0 0.0
        %930 = vmatprep.subr.mxu0 0.0
        %931 = vmatpush1.xpose.msra.mxu0 0.0
        %932 = vmatprep.subr.mxu0 0.0
        %933 = vmatpush1.xpose.msra.mxu0 0.0
        %934 = vmatprep.subr.mxu0 0.0
        %935 = vmatpush1.xpose.msra.mxu0 0.0
        %936 = vmatprep.subr.mxu0 0.0
        %937 = vmatpush1.xpose.msra.mxu0 0.0
        %938 = vmatprep.subr.mxu0 0.0
        %939 = vmatpush1.xpose.msra.mxu0 0.0
        %940 = vmatprep.subr.mxu0 0.0
        %941 = vmatpush1.xpose.msra.mxu0 0.0
        %942 = vmatprep.subr.mxu0 0.0
        %943 = vmatpush1.xpose.msra.mxu0 0.0
        %944 = vmatprep.subr.mxu0 0.0
        %945 = vmatpush1.xpose.msra.mxu0 0.0
        %946 = vmatprep.subr.mxu0 0.0
        %947 = vmatpush1.xpose.msra.mxu0 0.0
        %948 = vmatprep.subr.mxu0 0.0
        %949 = vmatpush1.xpose.msra.mxu0 0.0
        %950 = vmatprep.subr.mxu0 0.0
        %951 = vmatpush1.xpose.msra.mxu0 0.0
        %952 = vmatprep.subr.mxu0 0.0
        %953 = vmatpush1.xpose.msra.mxu0 0.0
        %954 = vmatprep.subr.mxu0 0.0
        %955 = vmatpush1.xpose.msra.mxu0 0.0
        %956 = vmatprep.subr.mxu0 0.0
        %957 = vmatpush1.xpose.msra.mxu0 0.0
        %958 = vmatprep.subr.mxu0 0.0
        %959 = vmatpush1.xpose.msra.mxu0 0.0
        %960 = vmatprep.subr.mxu0 0.0
        %961 = vmatpush1.xpose.msra.mxu0 0.0
        %962 = vmatprep.subr.mxu0 0.0
        %963 = vmatpush1.xpose.msra.mxu0 0.0
        %964 = vmatprep.mubr.f32.mxu0 0.0
        %965 = vmatmul.mubr.f32.gmra.mrb[0].mxu0 %v896
        %v966 = vpop.f32.mrb[0].mxu0
        %v967 = vadd.f32 0.0, %v966
        %v968 = vpop.f32.mrb[0].mxu0
        %969 = vdwg.mxu0
        %v970 = vmul.f32 %v967, 0.35355338
        %v971 = vsub.f32 %v970, %v620
        %v972 = vsel %vm540, %v971, -inf
        %973 = vmax.xlane.f32.xlu0 %v972
        %v974 = vpop.xlane.xlu0 %973
        %v975 = vsub.f32 %v971, %v974
        %v976 = vmul.f32 %v975, 1.442695
        %v977 = vpow.pop %v976
        %v978 = vsel %vm540, %v977, 0.0
        %979 = vadd.xlane.f32.xlu0 %v978
        %v980 = vpop.xlane.xlu0 %979
        %v981 = vrcp.pop %v980
        %v982 = vmul.f32 %v977, %v637
        %v983 = vmul.f32 %v982, %v981
        %984 = vrot.lane.b32.xlu0 %v532, 48
        %v985 = vpop.permute.xlu0 %984
        %v988 = vsel %vm540, %v983, 0
        %990 = vmatprep.subr.mxu0 0.0
        %991 = vmatpush1.msra.mxu0 %v985
        %992 = vmatprep.subr.mxu0 0.0
        %993 = vmatpush1.msra.mxu0 0.0
        %994 = vmatprep.subr.mxu0 0.0
        %995 = vmatpush1.msra.mxu0 0.0
        %996 = vmatprep.subr.mxu0 0.0
        %997 = vmatpush1.msra.mxu0 0.0
        %998 = vmatprep.subr.mxu0 0.0
        %999 = vmatpush1.msra.mxu0 0.0
        %1000 = vmatprep.subr.mxu0 0.0
        %1001 = vmatpush1.msra.mxu0 0.0
        %1002 = vmatprep.subr.mxu0 0.0
        %1003 = vmatpush1.msra.mxu0 0.0
        %1004 = vmatprep.subr.mxu0 0.0
        %1005 = vmatpush1.msra.mxu0 0.0
        %1006 = vmatprep.subr.mxu0 0.0
        %1007 = vmatpush1.msra.mxu0 0.0
        %1008 = vmatprep.subr.mxu0 0.0
        %1009 = vmatpush1.msra.mxu0 0.0
        %1010 = vmatprep.subr.mxu0 0.0
        %1011 = vmatpush1.msra.mxu0 0.0
        %1012 = vmatprep.subr.mxu0 0.0
        %1013 = vmatpush1.msra.mxu0 0.0
        %1014 = vmatprep.subr.mxu0 0.0
        %1015 = vmatpush1.msra.mxu0 0.0
        %1016 = vmatprep.subr.mxu0 0.0
        %1017 = vmatpush1.msra.mxu0 0.0
        %1018 = vmatprep.subr.mxu0 0.0
        %1019 = vmatpush1.msra.mxu0 0.0
        %1020 = vmatprep.subr.mxu0 0.0
        %1021 = vmatpush1.msra.mxu0 0.0
        %1022 = vmatprep.subr.mxu0 0.0
        %1023 = vmatpush1.msra.mxu0 0.0
        %1024 = vmatprep.subr.mxu0 0.0
        %1025 = vmatpush1.msra.mxu0 0.0
        %1026 = vmatprep.subr.mxu0 0.0
        %1027 = vmatpush1.msra.mxu0 0.0
        %1028 = vmatprep.subr.mxu0 0.0
        %1029 = vmatpush1.msra.mxu0 0.0
        %1030 = vmatprep.subr.mxu0 0.0
        %1031 = vmatpush1.msra.mxu0 0.0
        %1032 = vmatprep.subr.mxu0 0.0
        %1033 = vmatpush1.msra.mxu0 0.0
        %1034 = vmatprep.subr.mxu0 0.0
        %1035 = vmatpush1.msra.mxu0 0.0
        %1036 = vmatprep.subr.mxu0 0.0
        %1037 = vmatpush1.msra.mxu0 0.0
        %1038 = vmatprep.subr.mxu0 0.0
        %1039 = vmatpush1.msra.mxu0 0.0
        %1040 = vmatprep.subr.mxu0 0.0
        %1041 = vmatpush1.msra.mxu0 0.0
        %1042 = vmatprep.subr.mxu0 0.0
        %1043 = vmatpush1.msra.mxu0 0.0
        %1044 = vmatprep.subr.mxu0 0.0
        %1045 = vmatpush1.msra.mxu0 0.0
        %1046 = vmatprep.subr.mxu0 0.0
        %1047 = vmatpush1.msra.mxu0 0.0
        %1048 = vmatprep.subr.mxu0 0.0
        %1049 = vmatpush1.msra.mxu0 0.0
        %1050 = vmatprep.subr.mxu0 0.0
        %1051 = vmatpush1.msra.mxu0 0.0
        %1052 = vmatprep.subr.mxu0 0.0
        %1053 = vmatpush1.msra.mxu0 0.0
        %1054 = vmatprep.mubr.f32.mxu0 0.0
        %1055 = vmatmul.mubr.f32.gmra.mrb[0].mxu0 %v988
        %v1056 = vpop.f32.mrb[0].mxu0
        %v1057 = vadd.f32 0.0, %v1056
        %v1058 = vpop.f32.mrb[0].mxu0
        %1059 = vdwg.mxu0
        %1061 = vrot.lane.b32.xlu0 %v1057, 16
        %v1062 = vpop.permute.xlu0 %1061
        %vm1064 = vcmask 195712
        %1065 = vst.msk [vmem:[#allocation2] sm:$0xff] %vm1064, %v1062
        %1066 = vrot.lane.b32.xlu0 %v532, 104
        %v1067 = vpop.permute.xlu0 %1066
        %1068 = vrot.lane.b32.xlu0 %v532, 72
        %v1069 = vpop.permute.xlu0 %1068
        %v1070 = vsel %vm540, %v1067, 0
        %v1072 = vsel %vm540, %v1069, 0
        %1074 = vmatprep.subr.mxu0 0.0
        %1075 = vmatpush1.xpose.msra.mxu0 %v1072
        %1076 = vmatprep.subr.mxu0 0.0
        %1077 = vmatpush1.xpose.msra.mxu0 0.0
        %1078 = vmatprep.subr.mxu0 0.0
        %1079 = vmatpush1.xpose.msra.mxu0 0.0
        %1080 = vmatprep.subr.mxu0 0.0
        %1081 = vmatpush1.xpose.msra.mxu0 0.0
        %1082 = vmatprep.subr.mxu0 0.0
        %1083 = vmatpush1.xpose.msra.mxu0 0.0
        %1084 = vmatprep.subr.mxu0 0.0
        %1085 = vmatpush1.xpose.msra.mxu0 0.0
        %1086 = vmatprep.subr.mxu0 0.0
        %1087 = vmatpush1.xpose.msra.mxu0 0.0
        %1088 = vmatprep.subr.mxu0 0.0
        %1089 = vmatpush1.xpose.msra.mxu0 0.0
        %1090 = vmatprep.subr.mxu0 0.0
        %1091 = vmatpush1.xpose.msra.mxu0 0.0
        %1092 = vmatprep.subr.mxu0 0.0
        %1093 = vmatpush1.xpose.msra.mxu0 0.0
        %1094 = vmatprep.subr.mxu0 0.0
        %1095 = vmatpush1.xpose.msra.mxu0 0.0
        %1096 = vmatprep.subr.mxu0 0.0
        %1097 = vmatpush1.xpose.msra.mxu0 0.0
        %1098 = vmatprep.subr.mxu0 0.0
        %1099 = vmatpush1.xpose.msra.mxu0 0.0
        %1100 = vmatprep.subr.mxu0 0.0
        %1101 = vmatpush1.xpose.msra.mxu0 0.0
        %1102 = vmatprep.subr.mxu0 0.0
        %1103 = vmatpush1.xpose.msra.mxu0 0.0
        %1104 = vmatprep.subr.mxu0 0.0
        %1105 = vmatpush1.xpose.msra.mxu0 0.0
        %1106 = vmatprep.subr.mxu0 0.0
        %1107 = vmatpush1.xpose.msra.mxu0 0.0
        %1108 = vmatprep.subr.mxu0 0.0
        %1109 = vmatpush1.xpose.msra.mxu0 0.0
        %1110 = vmatprep.subr.mxu0 0.0
        %1111 = vmatpush1.xpose.msra.mxu0 0.0
        %1112 = vmatprep.subr.mxu0 0.0
        %1113 = vmatpush1.xpose.msra.mxu0 0.0
        %1114 = vmatprep.subr.mxu0 0.0
        %1115 = vmatpush1.xpose.msra.mxu0 0.0
        %1116 = vmatprep.subr.mxu0 0.0
        %1117 = vmatpush1.xpose.msra.mxu0 0.0
        %1118 = vmatprep.subr.mxu0 0.0
        %1119 = vmatpush1.xpose.msra.mxu0 0.0
        %1120 = vmatprep.subr.mxu0 0.0
        %1121 = vmatpush1.xpose.msra.mxu0 0.0
        %1122 = vmatprep.subr.mxu0 0.0
        %1123 = vmatpush1.xpose.msra.mxu0 0.0
        %1124 = vmatprep.subr.mxu0 0.0
        %1125 = vmatpush1.xpose.msra.mxu0 0.0
        %1126 = vmatprep.subr.mxu0 0.0
        %1127 = vmatpush1.xpose.msra.mxu0 0.0
        %1128 = vmatprep.subr.mxu0 0.0
        %1129 = vmatpush1.xpose.msra.mxu0 0.0
        %1130 = vmatprep.subr.mxu0 0.0
        %1131 = vmatpush1.xpose.msra.mxu0 0.0
        %1132 = vmatprep.subr.mxu0 0.0
        %1133 = vmatpush1.xpose.msra.mxu0 0.0
        %1134 = vmatprep.subr.mxu0 0.0
        %1135 = vmatpush1.xpose.msra.mxu0 0.0
        %1136 = vmatprep.subr.mxu0 0.0
        %1137 = vmatpush1.xpose.msra.mxu0 0.0
        %1138 = vmatprep.mubr.f32.mxu0 0.0
        %1139 = vmatmul.mubr.f32.gmra.mrb[0].mxu0 %v1070
        %v1140 = vpop.f32.mrb[0].mxu0
        %v1141 = vadd.f32 0.0, %v1140
        %v1142 = vpop.f32.mrb[0].mxu0
        %1143 = vdwg.mxu0
        %v1144 = vmul.f32 %v1141, 0.35355338
        %v1145 = vsub.f32 %v1144, %v620
        %v1146 = vsel %vm540, %v1145, -inf
        %1147 = vmax.xlane.f32.xlu0 %v1146
        %v1148 = vpop.xlane.xlu0 %1147
        %v1149 = vsub.f32 %v1145, %v1148
        %v1150 = vmul.f32 %v1149, 1.442695
        %v1151 = vpow.pop %v1150
        %v1152 = vsel %vm540, %v1151, 0.0
        %1153 = vadd.xlane.f32.xlu0 %v1152
        %v1154 = vpop.xlane.xlu0 %1153
        %v1155 = vrcp.pop %v1154
        %v1156 = vmul.f32 %v1151, %v637
        %v1157 = vmul.f32 %v1156, %v1155
        %1158 = vrot.lane.b32.xlu0 %v532, 40
        %v1159 = vpop.permute.xlu0 %1158
        %v1162 = vsel %vm540, %v1157, 0
        %1164 = vmatprep.subr.mxu0 0.0
        %1165 = vmatpush1.msra.mxu0 %v1159
        %1166 = vmatprep.subr.mxu0 0.0
        %1167 = vmatpush1.msra.mxu0 0.0
        %1168 = vmatprep.subr.mxu0 0.0
        %1169 = vmatpush1.msra.mxu0 0.0
        %1170 = vmatprep.subr.mxu0 0.0
        %1171 = vmatpush1.msra.mxu0 0.0
        %1172 = vmatprep.subr.mxu0 0.0
        %1173 = vmatpush1.msra.mxu0 0.0
        %1174 = vmatprep.subr.mxu0 0.0
        %1175 = vmatpush1.msra.mxu0 0.0
        %1176 = vmatprep.subr.mxu0 0.0
        %1177 = vmatpush1.msra.mxu0 0.0
        %1178 = vmatprep.subr.mxu0 0.0
        %1179 = vmatpush1.msra.mxu0 0.0
        %1180 = vmatprep.subr.mxu0 0.0
        %1181 = vmatpush1.msra.mxu0 0.0
        %1182 = vmatprep.subr.mxu0 0.0
        %1183 = vmatpush1.msra.mxu0 0.0
        %1184 = vmatprep.subr.mxu0 0.0
        %1185 = vmatpush1.msra.mxu0 0.0
        %1186 = vmatprep.subr.mxu0 0.0
        %1187 = vmatpush1.msra.mxu0 0.0
        %1188 = vmatprep.subr.mxu0 0.0
        %1189 = vmatpush1.msra.mxu0 0.0
        %1190 = vmatprep.subr.mxu0 0.0
        %1191 = vmatpush1.msra.mxu0 0.0
        %1192 = vmatprep.subr.mxu0 0.0
        %1193 = vmatpush1.msra.mxu0 0.0
        %1194 = vmatprep.subr.mxu0 0.0
        %1195 = vmatpush1.msra.mxu0 0.0
        %1196 = vmatprep.subr.mxu0 0.0
        %1197 = vmatpush1.msra.mxu0 0.0
        %1198 = vmatprep.subr.mxu0 0.0
        %1199 = vmatpush1.msra.mxu0 0.0
        %1200 = vmatprep.subr.mxu0 0.0
        %1201 = vmatpush1.msra.mxu0 0.0
        %1202 = vmatprep.subr.mxu0 0.0
        %1203 = vmatpush1.msra.mxu0 0.0
        %1204 = vmatprep.subr.mxu0 0.0
        %1205 = vmatpush1.msra.mxu0 0.0
        %1206 = vmatprep.subr.mxu0 0.0
        %1207 = vmatpush1.msra.mxu0 0.0
        %1208 = vmatprep.subr.mxu0 0.0
        %1209 = vmatpush1.msra.mxu0 0.0
        %1210 = vmatprep.subr.mxu0 0.0
        %1211 = vmatpush1.msra.mxu0 0.0
        %1212 = vmatprep.subr.mxu0 0.0
        %1213 = vmatpush1.msra.mxu0 0.0
        %1214 = vmatprep.subr.mxu0 0.0
        %1215 = vmatpush1.msra.mxu0 0.0
        %1216 = vmatprep.subr.mxu0 0.0
        %1217 = vmatpush1.msra.mxu0 0.0
        %1218 = vmatprep.subr.mxu0 0.0
        %1219 = vmatpush1.msra.mxu0 0.0
        %1220 = vmatprep.subr.mxu0 0.0
        %1221 = vmatpush1.msra.mxu0 0.0
        %1222 = vmatprep.subr.mxu0 0.0
        %1223 = vmatpush1.msra.mxu0 0.0
        %1224 = vmatprep.subr.mxu0 0.0
        %1225 = vmatpush1.msra.mxu0 0.0
        %1226 = vmatprep.subr.mxu0 0.0
        %1227 = vmatpush1.msra.mxu0 0.0
        %1228 = vmatprep.mubr.f32.mxu0 0.0
        %1229 = vmatmul.mubr.f32.gmra.mrb[0].mxu0 %v1162
        %v1230 = vpop.f32.mrb[0].mxu0
        %v1231 = vadd.f32 0.0, %v1230
        %v1232 = vpop.f32.mrb[0].mxu0
        %1233 = vdwg.mxu0
        %1235 = vrot.lane.b32.xlu0 %v1231, 24
        %v1236 = vpop.permute.xlu0 %1235
        %vm1238 = vcmask 261312
        %1239 = vst.msk [vmem:[#allocation2] sm:$0xff] %vm1238, %v1236
        %v1240 = vld [vmem:[#allocation2] sm:$0xff]
        %v1241 = vld [vmem:[#allocation8] sm:$0xff]
        %v1242 = vld [vmem:[#allocation8 + $0x8] sm:$0xff]
        %v1243 = vld [vmem:[#allocation8 + $0x10] sm:$0xff]
        %v1244 = vld [vmem:[#allocation8 + $0x18] sm:$0xff]
        %v1245 = vld [vmem:[%s7] sm:$0x1]
        %v1247 = vlaneseq
        %v1248 = vshrl.u32 %v1247, 7
        %v1249 = vsub.s32 0, %v1248
        %v1250 = vrot.slane %v1245, %v1249
        %v1253 = vsel %vm422, %v1240, 0
        %1255 = vmatprep.subr.mxu0 0.0
        %1256 = vmatpush1.msra.mxu0 %v1241
        %1257 = vmatprep.subr.mxu0 0.0
        %1258 = vmatpush1.msra.mxu0 %v1242
        %1259 = vmatprep.subr.mxu0 0.0
        %1260 = vmatpush1.msra.mxu0 %v1243
        %1261 = vmatprep.subr.mxu0 0.0
        %1262 = vmatpush1.msra.mxu0 %v1244
        %1263 = vmatprep.subr.mxu0 0.0
        %1264 = vmatpush1.msra.mxu0 0.0
        %1265 = vmatprep.subr.mxu0 0.0
        %1266 = vmatpush1.msra.mxu0 0.0
        %1267 = vmatprep.subr.mxu0 0.0
        %1268 = vmatpush1.msra.mxu0 0.0
        %1269 = vmatprep.subr.mxu0 0.0
        %1270 = vmatpush1.msra.mxu0 0.0
        %1271 = vmatprep.subr.mxu0 0.0
        %1272 = vmatpush1.msra.mxu0 0.0
        %1273 = vmatprep.subr.mxu0 0.0
        %1274 = vmatpush1.msra.mxu0 0.0
        %1275 = vmatprep.subr.mxu0 0.0
        %1276 = vmatpush1.msra.mxu0 0.0
        %1277 = vmatprep.subr.mxu0 0.0
        %1278 = vmatpush1.msra.mxu0 0.0
        %1279 = vmatprep.subr.mxu0 0.0
        %1280 = vmatpush1.msra.mxu0 0.0
        %1281 = vmatprep.subr.mxu0 0.0
        %1282 = vmatpush1.msra.mxu0 0.0
        %1283 = vmatprep.subr.mxu0 0.0
        %1284 = vmatpush1.msra.mxu0 0.0
        %1285 = vmatprep.subr.mxu0 0.0
        %1286 = vmatpush1.msra.mxu0 0.0
        %1287 = vmatprep.subr.mxu0 0.0
        %1288 = vmatpush1.msra.mxu0 0.0
        %1289 = vmatprep.subr.mxu0 0.0
        %1290 = vmatpush1.msra.mxu0 0.0
        %1291 = vmatprep.subr.mxu0 0.0
        %1292 = vmatpush1.msra.mxu0 0.0
        %1293 = vmatprep.subr.mxu0 0.0
        %1294 = vmatpush1.msra.mxu0 0.0
        %1295 = vmatprep.subr.mxu0 0.0
        %1296 = vmatpush1.msra.mxu0 0.0
        %1297 = vmatprep.subr.mxu0 0.0
        %1298 = vmatpush1.msra.mxu0 0.0
        %1299 = vmatprep.subr.mxu0 0.0
        %1300 = vmatpush1.msra.mxu0 0.0
        %1301 = vmatprep.subr.mxu0 0.0
        %1302 = vmatpush1.msra.mxu0 0.0
        %1303 = vmatprep.subr.mxu0 0.0
        %1304 = vmatpush1.msra.mxu0 0.0
        %1305 = vmatprep.subr.mxu0 0.0
        %1306 = vmatpush1.msra.mxu0 0.0
        %1307 = vmatprep.subr.mxu0 0.0
        %1308 = vmatpush1.msra.mxu0 0.0
        %1309 = vmatprep.subr.mxu0 0.0
        %1310 = vmatpush1.msra.mxu0 0.0
        %1311 = vmatprep.subr.mxu0 0.0
        %1312 = vmatpush1.msra.mxu0 0.0
        %1313 = vmatprep.subr.mxu0 0.0
        %1314 = vmatpush1.msra.mxu0 0.0
        %1315 = vmatprep.subr.mxu0 0.0
        %1316 = vmatpush1.msra.mxu0 0.0
        %1317 = vmatprep.subr.mxu0 0.0
        %1318 = vmatpush1.msra.mxu0 0.0
        %1319 = vmatprep.mubr.f32.mxu0 0.0
        %1320 = vmatmul.mubr.f32.gmra.mrb[0].mxu0 %v1253
        %v1321 = vpop.f32.mrb[0].mxu0
        %v1322 = vadd.f32 %v1250, %v1321
        %v1323 = vpop.f32.mrb[0].mxu0
        %1324 = vdwg.mxu0
        %v1325 = vadd.f32 %v418, %v1322
        %v1326 = vld [vmem:[%s8] sm:$0x1]
        %v1327 = vld [vmem:[%s9] sm:$0x1]
        %v1328 = vsel %vm422, %v1325, 0.0
        %1329 = vadd.xlane.f32.xlu0 %v1328
        %v1330 = vpop.xlane.xlu0 %1329
        %v1331 = vmul.f32 %v1330, %v426
        %v1332 = vsub.f32 %v1325, %v1331
        %v1333 = vmul.f32 %v1332, %v1332
        %v1334 = vsel %vm422, %v1333, 0.0
        %1335 = vadd.xlane.f32.xlu0 %v1334
        %v1336 = vpop.xlane.xlu0 %1335
        %v1337 = vmul.f32 %v1336, %v426
        %v1338 = vadd.f32 %v1337, 1e-05
        %v1339 = vrsqrt.pop %v1338
        %v1340 = vmul.f32 %v1332, %v1339
        %v1342 = vlaneseq
        %v1343 = vshrl.u32 %v1342, 7
        %v1344 = vsub.s32 0, %v1343
        %v1345 = vrot.slane %v1326, %v1344
        %v1347 = vmul.f32 %v1340, %v1345
        %v1349 = vlaneseq
        %v1350 = vshrl.u32 %v1349, 7
        %v1351 = vsub.s32 0, %v1350
        %v1352 = vrot.slane %v1327, %v1351
        %v1354 = vadd.f32 %v1347, %v1352
        %1355 = vst.msk [vmem:[%s414] sm:$0xff] %vm422, %v1354
        %s1356 = sand.u32 %s256, 1
        %s1357 = scalar_lea.sflag [#allocation5], %s1356
        %s1358 = sand.u32 %s256, 1
        %s1359 = smul.addr %s1358, 8
        %s1360 = scalar_lea.vmem [#allocation9], %s1359
        // Predicated region
        $region73: #{tpu_custom_call.1} parent=59 // pred_check
          %p1361 = pneg %p266
        $region74: #{tpu_custom_call.1} parent=59 // pred_check_branch
          %1363 = sbr.rel (%p1361) target = $region76
        $region75: #{tpu_custom_call.1} parent=59 // pred_region
          %s1365 = ssub.s32 128, 128
          %1366 = vsyncadd %s1357, %s1365
          %s1367 = smul.addr %s28, 128
          %s1368 = scalar_lea.hbm %s10, %s1367
          %s1370 = sshll.u32 %s1360, 4
          %s1371 = int_to_ptr.vmem [resolvable:$true] %s1370
          %1373 = dma.vmem_to_hbm [thread:$0]  %s1371, 128, %s1368, %s1357
        $region76: #{tpu_custom_call.1} parent=59 // pred_fallthru
          _
      $region60: #{tpu_custom_call.1} parent=5 // pred_fallthru
        _
      %p1374 = scmp.le.s32.totalorder 2, %s23
      // Predicated region
      $region77: #{tpu_custom_call.1} parent=5 // pred_check
        %p1375 = pneg %p1374
      $region78: #{tpu_custom_call.1} parent=5 // pred_check_branch
        %1377 = sbr.rel (%p1375) target = $region80
      $region79: #{tpu_custom_call.1} parent=5 // pred_region
        %s1378 = ssub.s32 %s23, 2
        // Predicated region
        $region81: #{tpu_custom_call.1} parent=79 // pred_check
          %p1379 = pneg %p272
        $region82: #{tpu_custom_call.1} parent=79 // pred_check_branch
          %1381 = sbr.rel (%p1379) target = $region84
        $region83: #{tpu_custom_call.1} parent=79 // pred_region
          %s1382 = sand.u32 %s257, 1
          %s1383 = scalar_lea.sflag [#allocation5], %s1382
          %s1384 = sand.u32 %s257, 1
          %s1385 = smul.addr %s1384, 8
          %s1386 = scalar_lea.vmem [#allocation9], %s1385
          %1387 = dma.done %s1383, 128
        $region84: #{tpu_custom_call.1} parent=79 // pred_fallthru
          _
      $region80: #{tpu_custom_call.1} parent=5 // pred_fallthru
        _
    $region6: #{tpu_custom_call.1} parent=1 // loop_footer
      %s27 = sadd.s32 1, %s23
    $region7: #{tpu_custom_call.1} parent=1 // loop_footer_branch
      %22 = sbr.rel target = $region3
    $region8: #{tpu_custom_call.1} parent=1 // loop_exit
      _
    %1388 = vsyncpa [#allocation4], 1
    %s1389 = scalar_lea.sflag [#allocation4], 1
    %1390 = vsyncpa %s1389, 1
    %1391 = vsyncpa [#allocation7], 1
    %1392 = vsyncpa [#allocation5], 1
    %s1393 = scalar_lea.sflag [#allocation5], 1
    %1394 = vsyncpa %s1393, 1

</llo_original>
